<compile_context>
chip_gen: v6e
topology: v6e:2x2x1
jax: 0.10.0
libtpu: 0.0.40
codegen_flags: <defaults>
</compile_context>

<pallas_src>
import functools

import jax
import jax.numpy as jnp
from jax import lax
from jax.experimental import pallas as pl
from jax.experimental.pallas import tpu as pltpu


def _refm_kernel(x_ref, w1_ref, w2_ref, mask_ref, wb_ref, o_ref, pad_scr, *, W, OFF):
    # x_ref   : (1, C, HW) VMEM (caller dtype)   w1_ref: (Cr, C)   w2_ref: (C, Cr)
    # mask_ref: (7, HW) VMEM f32 (kx column-validity mask)
    # wb_ref  : SMEM (99,) f32  -> 98 conv weights [c*49 + ky*7 + kx] + bias at [98]
    # o_ref   : (1, C, HW) VMEM (caller dtype)
    # pad_scr : VMEM (2, HW + 2*OFF) f32 zero-padded flat stat slab
    HW = x_ref.shape[2]

    x = x_ref[0].astype(jnp.float32)                         # (C, HW), lane-dense

    # ---- channel attention (Inter_feature) ----
    avg_c = jnp.mean(x, axis=1, keepdims=True)               # (C, 1)  AdaptiveAvgPool2d(1)
    max_c = jnp.max(x, axis=1, keepdims=True)                # (C, 1)  AdaptiveMaxPool2d(1)
    w1 = w1_ref[...].astype(jnp.float32)
    w2 = w2_ref[...].astype(jnp.float32)
    h_a = jnp.maximum(jnp.dot(w1, avg_c, preferred_element_type=jnp.float32), 0.0)
    h_m = jnp.maximum(jnp.dot(w1, max_c, preferred_element_type=jnp.float32), 0.0)
    # W2 has no bias: W2 relu(W1 a) + W2 relu(W1 m) == W2 (relu(W1 a)+relu(W1 m))
    y = jnp.dot(w2, h_a + h_m, preferred_element_type=jnp.float32)   # (C, 1)
    att_c = jax.nn.sigmoid(y)                                # (C, 1)
    out1 = x * att_c                                         # inter_feature(x) * x (stays live)

    # ---- per-pixel channel stats into a zero-padded *flat* slab ----
    # Zero only the pad margins; the interior [OFF:OFF+HW] is fully overwritten.
    zero_margin = jnp.zeros((2, OFF), jnp.float32)
    pad_scr[:, 0:OFF] = zero_margin
    pad_scr[:, OFF + HW:OFF + HW + OFF] = zero_margin
    pad_scr[0:1, OFF:OFF + HW] = jnp.mean(out1, axis=0, keepdims=True)   # (1, HW)
    pad_scr[1:2, OFF:OFF + HW] = jnp.max(out1, axis=0, keepdims=True)    # (1, HW)

    # ---- 7x7 SAME conv evaluated in the flattened-HW domain ----
    # H-direction zero padding comes from the zero margins of pad_scr; the
    # W-direction padding is the per-kx column-validity mask, applied once per
    # kx group.  Conv weights are scalars read from SMEM (free sreg broadcast).
    acc = jnp.zeros((1, HW), dtype=jnp.float32)
    for kx in range(7):
        part = None
        for ky in range(7):
            off = OFF + (ky - 3) * W + (kx - 3)
            s_mean = pad_scr[0:1, off:off + HW]              # (1, HW)
            s_max = pad_scr[1:2, off:off + HW]               # (1, HW)
            contrib = (wb_ref[ky * 7 + kx] * s_mean
                       + wb_ref[49 + ky * 7 + kx] * s_max)
            part = contrib if part is None else part + contrib
        acc = acc + mask_ref[kx:kx + 1, :] * part
    att_s = jax.nn.sigmoid(acc + wb_ref[98])                 # (1, HW)

    # ---- final modulation: intra_feature(out) * out (single store) ----
    o_ref[0] = (out1 * att_s).astype(o_ref.dtype)


@jax.jit
def refm_forward(x, w1, w2, conv_w, conv_b):
    B, C, H, W = x.shape
    Cr = w1.shape[0]
    HW = H * W
    # pad margin for the flattened conv; round to a lane-tile multiple so the
    # interior store of the stat rows is lane-aligned.
    OFF = ((3 * W + 3 + 127) // 128) * 128

    # contiguous NCHW -> (B, C, HW) is a free reshape; no dtype cast (bf16 I/O ok).
    x2 = x.reshape(B, C, HW)

    # Per-kx column-validity mask (emulates W-direction zero padding), (7, HW).
    # It depends only on shapes, so XLA constant-folds it under jit.
    col = (jnp.arange(HW, dtype=jnp.int32) % W)[None, :]               # (1, HW)
    dx = jnp.arange(7, dtype=jnp.int32)[:, None] - 3                   # (7, 1)
    mask = ((col + dx >= 0) & (col + dx < W)).astype(jnp.float32)      # (7, HW)

    # 98 conv weights (c-major, then ky, kx) + bias as scalars for SMEM.
    wb = jnp.concatenate([conv_w.reshape(-1).astype(jnp.float32),
                          conv_b.reshape(-1).astype(jnp.float32)])     # (99,)

    # Explicit VMEM budget (matters most on v7x: 64 MiB phys / 32 MiB scoped).
    itemsize = jnp.dtype(x.dtype).itemsize
    vmem_est = (2 * C * HW * itemsize * 2            # in + out blocks, double-buffered
                + 2 * (HW + 2 * OFF) * 4             # flat stat scratch
                + 2 * (Cr * C + C * Cr) * 4          # MLP weights
                + 2 * 7 * HW * 4)                    # kx mask
    vmem_limit = min(max(2 * vmem_est, 16 * 1024 * 1024), 48 * 1024 * 1024)

    kernel = functools.partial(_refm_kernel, W=W, OFF=OFF)
    out_flat = pl.pallas_call(
        kernel,
        out_shape=jax.ShapeDtypeStruct((B, C, HW), x.dtype),
        grid=(B,),
        in_specs=[pl.BlockSpec((1, C, HW), lambda b: (b, 0, 0)),
                  pl.BlockSpec((Cr, C), lambda b: (0, 0)),
                  pl.BlockSpec((C, Cr), lambda b: (0, 0)),
                  pl.BlockSpec((7, HW), lambda b: (0, 0)),
                  pl.BlockSpec(memory_space=pltpu.MemorySpace.SMEM)],
        out_specs=pl.BlockSpec((1, C, HW), lambda b: (b, 0, 0)),
        scratch_shapes=[pltpu.VMEM((2, HW + 2 * OFF), jnp.float32)],
        compiler_params=pltpu.CompilerParams(
            dimension_semantics=("parallel",),
            vmem_limit_bytes=vmem_limit),
    )(x2, w1, w2, mask, wb)

    # (B, C, HW) and contiguous NCHW are the same bytes; reshape is free.
    return out_flat.reshape(B, C, H, W)


def ref_forward(x, w1, w2, conv_w, conv_b):
    # pure-JAX reference of the PyTorch REFM forward
    avg = jnp.mean(x, axis=(2, 3))
    mx = jnp.max(x, axis=(2, 3))

    def mlp(v):
        h = jax.nn.relu(v @ w1.T)
        return h @ w2.T

    att_c = jax.nn.sigmoid(mlp(avg) + mlp(mx))[:, :, None, None]
    out1 = att_c * x
    sp = jnp.concatenate([jnp.mean(out1, axis=1, keepdims=True),
                          jnp.max(out1, axis=1, keepdims=True)], axis=1)
    conv = lax.conv_general_dilated(sp, conv_w, (1, 1), ((3, 3), (3, 3)),
                                    dimension_numbers=("NCHW", "OIHW", "NCHW"))
    att_s = jax.nn.sigmoid(conv + conv_b.reshape(1, 1, 1, 1))
    return att_s * out1


if __name__ == "__main__":
    B, C, H, W = 2, 32, 16, 16
    ratio = 16
    Cr = C // ratio

    key = jax.random.PRNGKey(0)
    kx, k1, k2, kw, kb = jax.random.split(key, 5)
    x = jax.random.normal(kx, (B, C, H, W), jnp.float32)
    w1 = jax.random.normal(k1, (Cr, C), jnp.float32) * 0.1       # Conv2d(C, C//r, 1, bias=False)
    w2 = jax.random.normal(k2, (C, Cr), jnp.float32) * 0.1       # Conv2d(C//r, C, 1, bias=False)
    conv_w = jax.random.normal(kw, (1, 2, 7, 7), jnp.float32) * 0.1   # Conv2d(2, 1, 7, padding=3)
    conv_b = jax.random.normal(kb, (1,), jnp.float32) * 0.1

    out = jax.block_until_ready(refm_forward(x, w1, w2, conv_w, conv_b))
    ref = ref_forward(x, w1, w2, conv_w, conv_b)
    assert out.shape == (B, C, H, W)
    assert jnp.allclose(out, ref, atol=1e-4, rtol=1e-4), float(jnp.max(jnp.abs(out - ref)))
    print("KERNEL_OK")
</pallas_src>

<mosaic_0001>
module attributes {stable_mosaic.version = 11 : i64} {
  func.func @_refm_kernel(%arg0: i32, %arg1: memref<1x32x256xf32, #tpu.memory_space<vmem>>, %arg2: memref<2x32xf32, #tpu.memory_space<vmem>>, %arg3: memref<32x2xf32, #tpu.memory_space<vmem>>, %arg4: memref<7x256xf32, #tpu.memory_space<vmem>>, %arg5: memref<99xf32, #tpu.memory_space<smem>>, %arg6: memref<1x32x256xf32, #tpu.memory_space<vmem>>, %arg7: memref<2x512xf32, #tpu.memory_space<vmem>>) attributes {dimension_semantics = [#tpu.dimension_semantics<parallel>], iteration_bounds = array<i64: 2>, scalar_prefetch = 0 : i64, scratch_operands = 1 : i64, tpu.core_type = #tpu.core_type<tc>, window_params = [{transform_indices = @transform_0, window_bounds = array<i64: 1, 32, 256>}, {pipeline_mode = #tpu.pipeline_mode<synchronous>, transform_indices = @transform_1, window_bounds = array<i64: 2, 32>}, {pipeline_mode = #tpu.pipeline_mode<synchronous>, transform_indices = @transform_2, window_bounds = array<i64: 32, 2>}, {pipeline_mode = #tpu.pipeline_mode<synchronous>, transform_indices = @transform_3, window_bounds = array<i64: 7, 256>}, {transform_indices = @transform_4, window_bounds = array<i64: 99>}, {transform_indices = @transform_5, window_bounds = array<i64: 1, 32, 256>}]} {
    %c0 = arith.constant 0 : index
    %c0_0 = arith.constant 0 : index
    %c0_1 = arith.constant 0 : index
    %0 = vector.load %arg1[%c0, %c0_0, %c0_1] : memref<1x32x256xf32, #tpu.memory_space<vmem>>, vector<1x32x256xf32>
    %1 = vector.shape_cast %0 : vector<1x32x256xf32> to vector<32x256xf32>
    %cst = arith.constant dense<0.000000e+00> : vector<32xf32>
    %2 = vector.multi_reduction <add>, %1, %cst [1] : vector<32x256xf32> to vector<32xf32>
    %3 = vector.shape_cast %2 : vector<32xf32> to vector<32x1xf32>
    %cst_2 = arith.constant 2.560000e+02 : f32
    %4 = vector.broadcast %cst_2 : f32 to vector<32x1xf32>
    %5 = arith.divf %3, %4 : vector<32x1xf32>
    %cst_3 = arith.constant dense<0xFF800000> : vector<32xf32>
    %6 = vector.multi_reduction <maximumf>, %1, %cst_3 [1] : vector<32x256xf32> to vector<32xf32>
    %7 = vector.shape_cast %6 : vector<32xf32> to vector<32x1xf32>
    %c0_4 = arith.constant 0 : index
    %c0_5 = arith.constant 0 : index
    %8 = vector.load %arg2[%c0_4, %c0_5] : memref<2x32xf32, #tpu.memory_space<vmem>>, vector<2x32xf32>
    %c0_6 = arith.constant 0 : index
    %c0_7 = arith.constant 0 : index
    %9 = vector.load %arg3[%c0_6, %c0_7] : memref<32x2xf32, #tpu.memory_space<vmem>>, vector<32x2xf32>
    %cst_8 = arith.constant dense<0.000000e+00> : vector<2x1xf32>
    %10 = tpu.matmul %8, %5, %cst_8 {dimension_numbers = #tpu.dot_dimension_numbers<[1], [0], [0], [1], [0, 0, 1, 1], [], []>} : vector<2x32xf32>, vector<32x1xf32>, vector<2x1xf32> -> vector<2x1xf32>
    %cst_9 = arith.constant 0.000000e+00 : f32
    %11 = vector.broadcast %cst_9 : f32 to vector<2x1xf32>
    %12 = arith.maximumf %10, %11 : vector<2x1xf32>
    %cst_10 = arith.constant dense<0.000000e+00> : vector<2x1xf32>
    %13 = tpu.matmul %8, %7, %cst_10 {dimension_numbers = #tpu.dot_dimension_numbers<[1], [0], [0], [1], [0, 0, 1, 1], [], []>} : vector<2x32xf32>, vector<32x1xf32>, vector<2x1xf32> -> vector<2x1xf32>
    %cst_11 = arith.constant 0.000000e+00 : f32
    %14 = vector.broadcast %cst_11 : f32 to vector<2x1xf32>
    %15 = arith.maximumf %13, %14 : vector<2x1xf32>
    %16 = arith.addf %12, %15 : vector<2x1xf32>
    %cst_12 = arith.constant dense<0.000000e+00> : vector<32x1xf32>
    %17 = tpu.matmul %9, %16, %cst_12 {dimension_numbers = #tpu.dot_dimension_numbers<[1], [0], [0], [1], [0, 0, 1, 1], [], []>} : vector<32x2xf32>, vector<2x1xf32>, vector<32x1xf32> -> vector<32x1xf32>
    %18 = arith.negf %17 : vector<32x1xf32>
    %19 = math.exp %18 : vector<32x1xf32>
    %cst_13 = arith.constant 1.000000e+00 : f32
    %20 = vector.broadcast %cst_13 : f32 to vector<32x1xf32>
    %21 = arith.addf %20, %19 : vector<32x1xf32>
    %22 = arith.divf %20, %21 : vector<32x1xf32>
    %23 = vector.broadcast %22 : vector<32x1xf32> to vector<32x256xf32>
    %24 = arith.mulf %1, %23 : vector<32x256xf32>
    %cst_14 = arith.constant 0.000000e+00 : f32
    %25 = vector.broadcast %cst_14 : f32 to vector<2x128xf32>
    %c0_15 = arith.constant 0 : index
    %c0_16 = arith.constant 0 : index
    %26 = vector.load %arg7[%c0_15, %c0_16] : memref<2x512xf32, #tpu.memory_space<vmem>>, vector<2x128xf32>
    tpu.vector_store %arg7[%c0_15, %c0_16], %25 {strides = array<i32>} : memref<2x512xf32, #tpu.memory_space<vmem>>, vector<2x128xf32>,
    %c0_17 = arith.constant 0 : index
    %c384 = arith.constant 384 : index
    %27 = vector.load %arg7[%c0_17, %c384] : memref<2x512xf32, #tpu.memory_space<vmem>>, vector<2x128xf32>
    tpu.vector_store %arg7[%c0_17, %c384], %25 {strides = array<i32>} : memref<2x512xf32, #tpu.memory_space<vmem>>, vector<2x128xf32>,
    %cst_18 = arith.constant dense<0.000000e+00> : vector<256xf32>
    %28 = vector.multi_reduction <add>, %24, %cst_18 [0] : vector<32x256xf32> to vector<256xf32>
    %29 = vector.shape_cast %28 : vector<256xf32> to vector<1x256xf32>
    %cst_19 = arith.constant 3.200000e+01 : f32
    %30 = vector.broadcast %cst_19 : f32 to vector<1x256xf32>
    %31 = arith.divf %29, %30 : vector<1x256xf32>
    %c0_20 = arith.constant 0 : index
    %c128 = arith.constant 128 : index
    %32 = vector.load %arg7[%c0_20, %c128] : memref<2x512xf32, #tpu.memory_space<vmem>>, vector<1x256xf32>
    tpu.vector_store %arg7[%c0_20, %c128], %31 {strides = array<i32>} : memref<2x512xf32, #tpu.memory_space<vmem>>, vector<1x256xf32>,
    %cst_21 = arith.constant dense<0xFF800000> : vector<256xf32>
    %33 = vector.multi_reduction <maximumf>, %24, %cst_21 [0] : vector<32x256xf32> to vector<256xf32>
    %34 = vector.shape_cast %33 : vector<256xf32> to vector<1x256xf32>
    %c1 = arith.constant 1 : index
    %c128_22 = arith.constant 128 : index
    %35 = vector.load %arg7[%c1, %c128_22] : memref<2x512xf32, #tpu.memory_space<vmem>>, vector<1x256xf32>
    tpu.vector_store %arg7[%c1, %c128_22], %34 {strides = array<i32>} : memref<2x512xf32, #tpu.memory_space<vmem>>, vector<1x256xf32>,
    %cst_23 = arith.constant 0.000000e+00 : f32
    %36 = vector.broadcast %cst_23 : f32 to vector<1x256xf32>
    %c0_24 = arith.constant 0 : index
    %c77 = arith.constant 77 : index
    %37 = vector.load %arg7[%c0_24, %c77] : memref<2x512xf32, #tpu.memory_space<vmem>>, vector<1x256xf32>
    %c1_25 = arith.constant 1 : index
    %c77_26 = arith.constant 77 : index
    %38 = vector.load %arg7[%c1_25, %c77_26] : memref<2x512xf32, #tpu.memory_space<vmem>>, vector<1x256xf32>
    %c0_27 = arith.constant 0 : index
    %39 = memref.load %arg5[%c0_27] : memref<99xf32, #tpu.memory_space<smem>>
    %40 = vector.broadcast %39 : f32 to vector<1x256xf32>
    %41 = arith.mulf %40, %37 : vector<1x256xf32>
    %c49 = arith.constant 49 : index
    %42 = memref.load %arg5[%c49] : memref<99xf32, #tpu.memory_space<smem>>
    %43 = vector.broadcast %42 : f32 to vector<1x256xf32>
    %44 = arith.mulf %43, %38 : vector<1x256xf32>
    %45 = arith.addf %41, %44 : vector<1x256xf32>
    %c0_28 = arith.constant 0 : index
    %c93 = arith.constant 93 : index
    %46 = vector.load %arg7[%c0_28, %c93] : memref<2x512xf32, #tpu.memory_space<vmem>>, vector<1x256xf32>
    %c1_29 = arith.constant 1 : index
    %c93_30 = arith.constant 93 : index
    %47 = vector.load %arg7[%c1_29, %c93_30] : memref<2x512xf32, #tpu.memory_space<vmem>>, vector<1x256xf32>
    %c7 = arith.constant 7 : index
    %48 = memref.load %arg5[%c7] : memref<99xf32, #tpu.memory_space<smem>>
    %49 = vector.broadcast %48 : f32 to vector<1x256xf32>
    %50 = arith.mulf %49, %46 : vector<1x256xf32>
    %c56 = arith.constant 56 : index
    %51 = memref.load %arg5[%c56] : memref<99xf32, #tpu.memory_space<smem>>
    %52 = vector.broadcast %51 : f32 to vector<1x256xf32>
    %53 = arith.mulf %52, %47 : vector<1x256xf32>
    %54 = arith.addf %50, %53 : vector<1x256xf32>
    %55 = arith.addf %45, %54 : vector<1x256xf32>
    %c0_31 = arith.constant 0 : index
    %c109 = arith.constant 109 : index
    %56 = vector.load %arg7[%c0_31, %c109] : memref<2x512xf32, #tpu.memory_space<vmem>>, vector<1x256xf32>
    %c1_32 = arith.constant 1 : index
    %c109_33 = arith.constant 109 : index
    %57 = vector.load %arg7[%c1_32, %c109_33] : memref<2x512xf32, #tpu.memory_space<vmem>>, vector<1x256xf32>
    %c14 = arith.constant 14 : index
    %58 = memref.load %arg5[%c14] : memref<99xf32, #tpu.memory_space<smem>>
    %59 = vector.broadcast %58 : f32 to vector<1x256xf32>
    %60 = arith.mulf %59, %56 : vector<1x256xf32>
    %c63 = arith.constant 63 : index
    %61 = memref.load %arg5[%c63] : memref<99xf32, #tpu.memory_space<smem>>
    %62 = vector.broadcast %61 : f32 to vector<1x256xf32>
    %63 = arith.mulf %62, %57 : vector<1x256xf32>
    %64 = arith.addf %60, %63 : vector<1x256xf32>
    %65 = arith.addf %55, %64 : vector<1x256xf32>
    %c0_34 = arith.constant 0 : index
    %c125 = arith.constant 125 : index
    %66 = vector.load %arg7[%c0_34, %c125] : memref<2x512xf32, #tpu.memory_space<vmem>>, vector<1x256xf32>
    %c1_35 = arith.constant 1 : index
    %c125_36 = arith.constant 125 : index
    %67 = vector.load %arg7[%c1_35, %c125_36] : memref<2x512xf32, #tpu.memory_space<vmem>>, vector<1x256xf32>
    %c21 = arith.constant 21 : index
    %68 = memref.load %arg5[%c21] : memref<99xf32, #tpu.memory_space<smem>>
    %69 = vector.broadcast %68 : f32 to vector<1x256xf32>
    %70 = arith.mulf %69, %66 : vector<1x256xf32>
    %c70 = arith.constant 70 : index
    %71 = memref.load %arg5[%c70] : memref<99xf32, #tpu.memory_space<smem>>
    %72 = vector.broadcast %71 : f32 to vector<1x256xf32>
    %73 = arith.mulf %72, %67 : vector<1x256xf32>
    %74 = arith.addf %70, %73 : vector<1x256xf32>
    %75 = arith.addf %65, %74 : vector<1x256xf32>
    %c0_37 = arith.constant 0 : index
    %c141 = arith.constant 141 : index
    %76 = vector.load %arg7[%c0_37, %c141] : memref<2x512xf32, #tpu.memory_space<vmem>>, vector<1x256xf32>
    %c1_38 = arith.constant 1 : index
    %c141_39 = arith.constant 141 : index
    %77 = vector.load %arg7[%c1_38, %c141_39] : memref<2x512xf32, #tpu.memory_space<vmem>>, vector<1x256xf32>
    %c28 = arith.constant 28 : index
    %78 = memref.load %arg5[%c28] : memref<99xf32, #tpu.memory_space<smem>>
    %79 = vector.broadcast %78 : f32 to vector<1x256xf32>
    %80 = arith.mulf %79, %76 : vector<1x256xf32>
    %c77_40 = arith.constant 77 : index
    %81 = memref.load %arg5[%c77_40] : memref<99xf32, #tpu.memory_space<smem>>
    %82 = vector.broadcast %81 : f32 to vector<1x256xf32>
    %83 = arith.mulf %82, %77 : vector<1x256xf32>
    %84 = arith.addf %80, %83 : vector<1x256xf32>
    %85 = arith.addf %75, %84 : vector<1x256xf32>
    %c0_41 = arith.constant 0 : index
    %c157 = arith.constant 157 : index
    %86 = vector.load %arg7[%c0_41, %c157] : memref<2x512xf32, #tpu.memory_space<vmem>>, vector<1x256xf32>
    %c1_42 = arith.constant 1 : index
    %c157_43 = arith.constant 157 : index
    %87 = vector.load %arg7[%c1_42, %c157_43] : memref<2x512xf32, #tpu.memory_space<vmem>>, vector<1x256xf32>
    %c35 = arith.constant 35 : index
    %88 = memref.load %arg5[%c35] : memref<99xf32, #tpu.memory_space<smem>>
    %89 = vector.broadcast %88 : f32 to vector<1x256xf32>
    %90 = arith.mulf %89, %86 : vector<1x256xf32>
    %c84 = arith.constant 84 : index
    %91 = memref.load %arg5[%c84] : memref<99xf32, #tpu.memory_space<smem>>
    %92 = vector.broadcast %91 : f32 to vector<1x256xf32>
    %93 = arith.mulf %92, %87 : vector<1x256xf32>
    %94 = arith.addf %90, %93 : vector<1x256xf32>
    %95 = arith.addf %85, %94 : vector<1x256xf32>
    %c0_44 = arith.constant 0 : index
    %c173 = arith.constant 173 : index
    %96 = vector.load %arg7[%c0_44, %c173] : memref<2x512xf32, #tpu.memory_space<vmem>>, vector<1x256xf32>
    %c1_45 = arith.constant 1 : index
    %c173_46 = arith.constant 173 : index
    %97 = vector.load %arg7[%c1_45, %c173_46] : memref<2x512xf32, #tpu.memory_space<vmem>>, vector<1x256xf32>
    %c42 = arith.constant 42 : index
    %98 = memref.load %arg5[%c42] : memref<99xf32, #tpu.memory_space<smem>>
    %99 = vector.broadcast %98 : f32 to vector<1x256xf32>
    %100 = arith.mulf %99, %96 : vector<1x256xf32>
    %c91 = arith.constant 91 : index
    %101 = memref.load %arg5[%c91] : memref<99xf32, #tpu.memory_space<smem>>
    %102 = vector.broadcast %101 : f32 to vector<1x256xf32>
    %103 = arith.mulf %102, %97 : vector<1x256xf32>
    %104 = arith.addf %100, %103 : vector<1x256xf32>
    %105 = arith.addf %95, %104 : vector<1x256xf32>
    %c0_47 = arith.constant 0 : index
    %c0_48 = arith.constant 0 : index
    %106 = vector.load %arg4[%c0_47, %c0_48] : memref<7x256xf32, #tpu.memory_space<vmem>>, vector<1x256xf32>
    %107 = arith.mulf %106, %105 : vector<1x256xf32>
    %108 = arith.addf %36, %107 : vector<1x256xf32>
    %c0_49 = arith.constant 0 : index
    %c78 = arith.constant 78 : index
    %109 = vector.load %arg7[%c0_49, %c78] : memref<2x512xf32, #tpu.memory_space<vmem>>, vector<1x256xf32>
    %c1_50 = arith.constant 1 : index
    %c78_51 = arith.constant 78 : index
    %110 = vector.load %arg7[%c1_50, %c78_51] : memref<2x512xf32, #tpu.memory_space<vmem>>, vector<1x256xf32>
    %c1_52 = arith.constant 1 : index
    %111 = memref.load %arg5[%c1_52] : memref<99xf32, #tpu.memory_space<smem>>
    %112 = vector.broadcast %111 : f32 to vector<1x256xf32>
    %113 = arith.mulf %112, %109 : vector<1x256xf32>
    %c50 = arith.constant 50 : index
    %114 = memref.load %arg5[%c50] : memref<99xf32, #tpu.memory_space<smem>>
    %115 = vector.broadcast %114 : f32 to vector<1x256xf32>
    %116 = arith.mulf %115, %110 : vector<1x256xf32>
    %117 = arith.addf %113, %116 : vector<1x256xf32>
    %c0_53 = arith.constant 0 : index
    %c94 = arith.constant 94 : index
    %118 = vector.load %arg7[%c0_53, %c94] : memref<2x512xf32, #tpu.memory_space<vmem>>, vector<1x256xf32>
    %c1_54 = arith.constant 1 : index
    %c94_55 = arith.constant 94 : index
    %119 = vector.load %arg7[%c1_54, %c94_55] : memref<2x512xf32, #tpu.memory_space<vmem>>, vector<1x256xf32>
    %c8 = arith.constant 8 : index
    %120 = memref.load %arg5[%c8] : memref<99xf32, #tpu.memory_space<smem>>
    %121 = vector.broadcast %120 : f32 to vector<1x256xf32>
    %122 = arith.mulf %121, %118 : vector<1x256xf32>
    %c57 = arith.constant 57 : index
    %123 = memref.load %arg5[%c57] : memref<99xf32, #tpu.memory_space<smem>>
    %124 = vector.broadcast %123 : f32 to vector<1x256xf32>
    %125 = arith.mulf %124, %119 : vector<1x256xf32>
    %126 = arith.addf %122, %125 : vector<1x256xf32>
    %127 = arith.addf %117, %126 : vector<1x256xf32>
    %c0_56 = arith.constant 0 : index
    %c110 = arith.constant 110 : index
    %128 = vector.load %arg7[%c0_56, %c110] : memref<2x512xf32, #tpu.memory_space<vmem>>, vector<1x256xf32>
    %c1_57 = arith.constant 1 : index
    %c110_58 = arith.constant 110 : index
    %129 = vector.load %arg7[%c1_57, %c110_58] : memref<2x512xf32, #tpu.memory_space<vmem>>, vector<1x256xf32>
    %c15 = arith.constant 15 : index
    %130 = memref.load %arg5[%c15] : memref<99xf32, #tpu.memory_space<smem>>
    %131 = vector.broadcast %130 : f32 to vector<1x256xf32>
    %132 = arith.mulf %131, %128 : vector<1x256xf32>
    %c64 = arith.constant 64 : index
    %133 = memref.load %arg5[%c64] : memref<99xf32, #tpu.memory_space<smem>>
    %134 = vector.broadcast %133 : f32 to vector<1x256xf32>
    %135 = arith.mulf %134, %129 : vector<1x256xf32>
    %136 = arith.addf %132, %135 : vector<1x256xf32>
    %137 = arith.addf %127, %136 : vector<1x256xf32>
    %c0_59 = arith.constant 0 : index
    %c126 = arith.constant 126 : index
    %138 = vector.load %arg7[%c0_59, %c126] : memref<2x512xf32, #tpu.memory_space<vmem>>, vector<1x256xf32>
    %c1_60 = arith.constant 1 : index
    %c126_61 = arith.constant 126 : index
    %139 = vector.load %arg7[%c1_60, %c126_61] : memref<2x512xf32, #tpu.memory_space<vmem>>, vector<1x256xf32>
    %c22 = arith.constant 22 : index
    %140 = memref.load %arg5[%c22] : memref<99xf32, #tpu.memory_space<smem>>
    %141 = vector.broadcast %140 : f32 to vector<1x256xf32>
    %142 = arith.mulf %141, %138 : vector<1x256xf32>
    %c71 = arith.constant 71 : index
    %143 = memref.load %arg5[%c71] : memref<99xf32, #tpu.memory_space<smem>>
    %144 = vector.broadcast %143 : f32 to vector<1x256xf32>
    %145 = arith.mulf %144, %139 : vector<1x256xf32>
    %146 = arith.addf %142, %145 : vector<1x256xf32>
    %147 = arith.addf %137, %146 : vector<1x256xf32>
    %c0_62 = arith.constant 0 : index
    %c142 = arith.constant 142 : index
    %148 = vector.load %arg7[%c0_62, %c142] : memref<2x512xf32, #tpu.memory_space<vmem>>, vector<1x256xf32>
    %c1_63 = arith.constant 1 : index
    %c142_64 = arith.constant 142 : index
    %149 = vector.load %arg7[%c1_63, %c142_64] : memref<2x512xf32, #tpu.memory_space<vmem>>, vector<1x256xf32>
    %c29 = arith.constant 29 : index
    %150 = memref.load %arg5[%c29] : memref<99xf32, #tpu.memory_space<smem>>
    %151 = vector.broadcast %150 : f32 to vector<1x256xf32>
    %152 = arith.mulf %151, %148 : vector<1x256xf32>
    %c78_65 = arith.constant 78 : index
    %153 = memref.load %arg5[%c78_65] : memref<99xf32, #tpu.memory_space<smem>>
    %154 = vector.broadcast %153 : f32 to vector<1x256xf32>
    %155 = arith.mulf %154, %149 : vector<1x256xf32>
    %156 = arith.addf %152, %155 : vector<1x256xf32>
    %157 = arith.addf %147, %156 : vector<1x256xf32>
    %c0_66 = arith.constant 0 : index
    %c158 = arith.constant 158 : index
    %158 = vector.load %arg7[%c0_66, %c158] : memref<2x512xf32, #tpu.memory_space<vmem>>, vector<1x256xf32>
    %c1_67 = arith.constant 1 : index
    %c158_68 = arith.constant 158 : index
    %159 = vector.load %arg7[%c1_67, %c158_68] : memref<2x512xf32, #tpu.memory_space<vmem>>, vector<1x256xf32>
    %c36 = arith.constant 36 : index
    %160 = memref.load %arg5[%c36] : memref<99xf32, #tpu.memory_space<smem>>
    %161 = vector.broadcast %160 : f32 to vector<1x256xf32>
    %162 = arith.mulf %161, %158 : vector<1x256xf32>
    %c85 = arith.constant 85 : index
    %163 = memref.load %arg5[%c85] : memref<99xf32, #tpu.memory_space<smem>>
    %164 = vector.broadcast %163 : f32 to vector<1x256xf32>
    %165 = arith.mulf %164, %159 : vector<1x256xf32>
    %166 = arith.addf %162, %165 : vector<1x256xf32>
    %167 = arith.addf %157, %166 : vector<1x256xf32>
    %c0_69 = arith.constant 0 : index
    %c174 = arith.constant 174 : index
    %168 = vector.load %arg7[%c0_69, %c174] : memref<2x512xf32, #tpu.memory_space<vmem>>, vector<1x256xf32>
    %c1_70 = arith.constant 1 : index
    %c174_71 = arith.constant 174 : index
    %169 = vector.load %arg7[%c1_70, %c174_71] : memref<2x512xf32, #tpu.memory_space<vmem>>, vector<1x256xf32>
    %c43 = arith.constant 43 : index
    %170 = memref.load %arg5[%c43] : memref<99xf32, #tpu.memory_space<smem>>
    %171 = vector.broadcast %170 : f32 to vector<1x256xf32>
    %172 = arith.mulf %171, %168 : vector<1x256xf32>
    %c92 = arith.constant 92 : index
    %173 = memref.load %arg5[%c92] : memref<99xf32, #tpu.memory_space<smem>>
    %174 = vector.broadcast %173 : f32 to vector<1x256xf32>
    %175 = arith.mulf %174, %169 : vector<1x256xf32>
    %176 = arith.addf %172, %175 : vector<1x256xf32>
    %177 = arith.addf %167, %176 : vector<1x256xf32>
    %c1_72 = arith.constant 1 : index
    %c0_73 = arith.constant 0 : index
    %178 = vector.load %arg4[%c1_72, %c0_73] : memref<7x256xf32, #tpu.memory_space<vmem>>, vector<1x256xf32>
    %179 = arith.mulf %178, %177 : vector<1x256xf32>
    %180 = arith.addf %108, %179 : vector<1x256xf32>
    %c0_74 = arith.constant 0 : index
    %c79 = arith.constant 79 : index
    %181 = vector.load %arg7[%c0_74, %c79] : memref<2x512xf32, #tpu.memory_space<vmem>>, vector<1x256xf32>
    %c1_75 = arith.constant 1 : index
    %c79_76 = arith.constant 79 : index
    %182 = vector.load %arg7[%c1_75, %c79_76] : memref<2x512xf32, #tpu.memory_space<vmem>>, vector<1x256xf32>
    %c2 = arith.constant 2 : index
    %183 = memref.load %arg5[%c2] : memref<99xf32, #tpu.memory_space<smem>>
    %184 = vector.broadcast %183 : f32 to vector<1x256xf32>
    %185 = arith.mulf %184, %181 : vector<1x256xf32>
    %c51 = arith.constant 51 : index
    %186 = memref.load %arg5[%c51] : memref<99xf32, #tpu.memory_space<smem>>
    %187 = vector.broadcast %186 : f32 to vector<1x256xf32>
    %188 = arith.mulf %187, %182 : vector<1x256xf32>
    %189 = arith.addf %185, %188 : vector<1x256xf32>
    %c0_77 = arith.constant 0 : index
    %c95 = arith.constant 95 : index
    %190 = vector.load %arg7[%c0_77, %c95] : memref<2x512xf32, #tpu.memory_space<vmem>>, vector<1x256xf32>
    %c1_78 = arith.constant 1 : index
    %c95_79 = arith.constant 95 : index
    %191 = vector.load %arg7[%c1_78, %c95_79] : memref<2x512xf32, #tpu.memory_space<vmem>>, vector<1x256xf32>
    %c9 = arith.constant 9 : index
    %192 = memref.load %arg5[%c9] : memref<99xf32, #tpu.memory_space<smem>>
    %193 = vector.broadcast %192 : f32 to vector<1x256xf32>
    %194 = arith.mulf %193, %190 : vector<1x256xf32>
    %c58 = arith.constant 58 : index
    %195 = memref.load %arg5[%c58] : memref<99xf32, #tpu.memory_space<smem>>
    %196 = vector.broadcast %195 : f32 to vector<1x256xf32>
    %197 = arith.mulf %196, %191 : vector<1x256xf32>
    %198 = arith.addf %194, %197 : vector<1x256xf32>
    %199 = arith.addf %189, %198 : vector<1x256xf32>
    %c0_80 = arith.constant 0 : index
    %c111 = arith.constant 111 : index
    %200 = vector.load %arg7[%c0_80, %c111] : memref<2x512xf32, #tpu.memory_space<vmem>>, vector<1x256xf32>
    %c1_81 = arith.constant 1 : index
    %c111_82 = arith.constant 111 : index
    %201 = vector.load %arg7[%c1_81, %c111_82] : memref<2x512xf32, #tpu.memory_space<vmem>>, vector<1x256xf32>
    %c16 = arith.constant 16 : index
    %202 = memref.load %arg5[%c16] : memref<99xf32, #tpu.memory_space<smem>>
    %203 = vector.broadcast %202 : f32 to vector<1x256xf32>
    %204 = arith.mulf %203, %200 : vector<1x256xf32>
    %c65 = arith.constant 65 : index
    %205 = memref.load %arg5[%c65] : memref<99xf32, #tpu.memory_space<smem>>
    %206 = vector.broadcast %205 : f32 to vector<1x256xf32>
    %207 = arith.mulf %206, %201 : vector<1x256xf32>
    %208 = arith.addf %204, %207 : vector<1x256xf32>
    %209 = arith.addf %199, %208 : vector<1x256xf32>
    %c0_83 = arith.constant 0 : index
    %c127 = arith.constant 127 : index
    %210 = vector.load %arg7[%c0_83, %c127] : memref<2x512xf32, #tpu.memory_space<vmem>>, vector<1x256xf32>
    %c1_84 = arith.constant 1 : index
    %c127_85 = arith.constant 127 : index
    %211 = vector.load %arg7[%c1_84, %c127_85] : memref<2x512xf32, #tpu.memory_space<vmem>>, vector<1x256xf32>
    %c23 = arith.constant 23 : index
    %212 = memref.load %arg5[%c23] : memref<99xf32, #tpu.memory_space<smem>>
    %213 = vector.broadcast %212 : f32 to vector<1x256xf32>
    %214 = arith.mulf %213, %210 : vector<1x256xf32>
    %c72 = arith.constant 72 : index
    %215 = memref.load %arg5[%c72] : memref<99xf32, #tpu.memory_space<smem>>
    %216 = vector.broadcast %215 : f32 to vector<1x256xf32>
    %217 = arith.mulf %216, %211 : vector<1x256xf32>
    %218 = arith.addf %214, %217 : vector<1x256xf32>
    %219 = arith.addf %209, %218 : vector<1x256xf32>
    %c0_86 = arith.constant 0 : index
    %c143 = arith.constant 143 : index
    %220 = vector.load %arg7[%c0_86, %c143] : memref<2x512xf32, #tpu.memory_space<vmem>>, vector<1x256xf32>
    %c1_87 = arith.constant 1 : index
    %c143_88 = arith.constant 143 : index
    %221 = vector.load %arg7[%c1_87, %c143_88] : memref<2x512xf32, #tpu.memory_space<vmem>>, vector<1x256xf32>
    %c30 = arith.constant 30 : index
    %222 = memref.load %arg5[%c30] : memref<99xf32, #tpu.memory_space<smem>>
    %223 = vector.broadcast %222 : f32 to vector<1x256xf32>
    %224 = arith.mulf %223, %220 : vector<1x256xf32>
    %c79_89 = arith.constant 79 : index
    %225 = memref.load %arg5[%c79_89] : memref<99xf32, #tpu.memory_space<smem>>
    %226 = vector.broadcast %225 : f32 to vector<1x256xf32>
    %227 = arith.mulf %226, %221 : vector<1x256xf32>
    %228 = arith.addf %224, %227 : vector<1x256xf32>
    %229 = arith.addf %219, %228 : vector<1x256xf32>
    %c0_90 = arith.constant 0 : index
    %c159 = arith.constant 159 : index
    %230 = vector.load %arg7[%c0_90, %c159] : memref<2x512xf32, #tpu.memory_space<vmem>>, vector<1x256xf32>
    %c1_91 = arith.constant 1 : index
    %c159_92 = arith.constant 159 : index
    %231 = vector.load %arg7[%c1_91, %c159_92] : memref<2x512xf32, #tpu.memory_space<vmem>>, vector<1x256xf32>
    %c37 = arith.constant 37 : index
    %232 = memref.load %arg5[%c37] : memref<99xf32, #tpu.memory_space<smem>>
    %233 = vector.broadcast %232 : f32 to vector<1x256xf32>
    %234 = arith.mulf %233, %230 : vector<1x256xf32>
    %c86 = arith.constant 86 : index
    %235 = memref.load %arg5[%c86] : memref<99xf32, #tpu.memory_space<smem>>
    %236 = vector.broadcast %235 : f32 to vector<1x256xf32>
    %237 = arith.mulf %236, %231 : vector<1x256xf32>
    %238 = arith.addf %234, %237 : vector<1x256xf32>
    %239 = arith.addf %229, %238 : vector<1x256xf32>
    %c0_93 = arith.constant 0 : index
    %c175 = arith.constant 175 : index
    %240 = vector.load %arg7[%c0_93, %c175] : memref<2x512xf32, #tpu.memory_space<vmem>>, vector<1x256xf32>
    %c1_94 = arith.constant 1 : index
    %c175_95 = arith.constant 175 : index
    %241 = vector.load %arg7[%c1_94, %c175_95] : memref<2x512xf32, #tpu.memory_space<vmem>>, vector<1x256xf32>
    %c44 = arith.constant 44 : index
    %242 = memref.load %arg5[%c44] : memref<99xf32, #tpu.memory_space<smem>>
    %243 = vector.broadcast %242 : f32 to vector<1x256xf32>
    %244 = arith.mulf %243, %240 : vector<1x256xf32>
    %c93_96 = arith.constant 93 : index
    %245 = memref.load %arg5[%c93_96] : memref<99xf32, #tpu.memory_space<smem>>
    %246 = vector.broadcast %245 : f32 to vector<1x256xf32>
    %247 = arith.mulf %246, %241 : vector<1x256xf32>
    %248 = arith.addf %244, %247 : vector<1x256xf32>
    %249 = arith.addf %239, %248 : vector<1x256xf32>
    %c2_97 = arith.constant 2 : index
    %c0_98 = arith.constant 0 : index
    %250 = vector.load %arg4[%c2_97, %c0_98] : memref<7x256xf32, #tpu.memory_space<vmem>>, vector<1x256xf32>
    %251 = arith.mulf %250, %249 : vector<1x256xf32>
    %252 = arith.addf %180, %251 : vector<1x256xf32>
    %c0_99 = arith.constant 0 : index
    %c80 = arith.constant 80 : index
    %253 = vector.load %arg7[%c0_99, %c80] : memref<2x512xf32, #tpu.memory_space<vmem>>, vector<1x256xf32>
    %c1_100 = arith.constant 1 : index
    %c80_101 = arith.constant 80 : index
    %254 = vector.load %arg7[%c1_100, %c80_101] : memref<2x512xf32, #tpu.memory_space<vmem>>, vector<1x256xf32>
    %c3 = arith.constant 3 : index
    %255 = memref.load %arg5[%c3] : memref<99xf32, #tpu.memory_space<smem>>
    %256 = vector.broadcast %255 : f32 to vector<1x256xf32>
    %257 = arith.mulf %256, %253 : vector<1x256xf32>
    %c52 = arith.constant 52 : index
    %258 = memref.load %arg5[%c52] : memref<99xf32, #tpu.memory_space<smem>>
    %259 = vector.broadcast %258 : f32 to vector<1x256xf32>
    %260 = arith.mulf %259, %254 : vector<1x256xf32>
    %261 = arith.addf %257, %260 : vector<1x256xf32>
    %c0_102 = arith.constant 0 : index
    %c96 = arith.constant 96 : index
    %262 = vector.load %arg7[%c0_102, %c96] : memref<2x512xf32, #tpu.memory_space<vmem>>, vector<1x256xf32>
    %c1_103 = arith.constant 1 : index
    %c96_104 = arith.constant 96 : index
    %263 = vector.load %arg7[%c1_103, %c96_104] : memref<2x512xf32, #tpu.memory_space<vmem>>, vector<1x256xf32>
    %c10 = arith.constant 10 : index
    %264 = memref.load %arg5[%c10] : memref<99xf32, #tpu.memory_space<smem>>
    %265 = vector.broadcast %264 : f32 to vector<1x256xf32>
    %266 = arith.mulf %265, %262 : vector<1x256xf32>
    %c59 = arith.constant 59 : index
    %267 = memref.load %arg5[%c59] : memref<99xf32, #tpu.memory_space<smem>>
    %268 = vector.broadcast %267 : f32 to vector<1x256xf32>
    %269 = arith.mulf %268, %263 : vector<1x256xf32>
    %270 = arith.addf %266, %269 : vector<1x256xf32>
    %271 = arith.addf %261, %270 : vector<1x256xf32>
    %c0_105 = arith.constant 0 : index
    %c112 = arith.constant 112 : index
    %272 = vector.load %arg7[%c0_105, %c112] : memref<2x512xf32, #tpu.memory_space<vmem>>, vector<1x256xf32>
    %c1_106 = arith.constant 1 : index
    %c112_107 = arith.constant 112 : index
    %273 = vector.load %arg7[%c1_106, %c112_107] : memref<2x512xf32, #tpu.memory_space<vmem>>, vector<1x256xf32>
    %c17 = arith.constant 17 : index
    %274 = memref.load %arg5[%c17] : memref<99xf32, #tpu.memory_space<smem>>
    %275 = vector.broadcast %274 : f32 to vector<1x256xf32>
    %276 = arith.mulf %275, %272 : vector<1x256xf32>
    %c66 = arith.constant 66 : index
    %277 = memref.load %arg5[%c66] : memref<99xf32, #tpu.memory_space<smem>>
    %278 = vector.broadcast %277 : f32 to vector<1x256xf32>
    %279 = arith.mulf %278, %273 : vector<1x256xf32>
    %280 = arith.addf %276, %279 : vector<1x256xf32>
    %281 = arith.addf %271, %280 : vector<1x256xf32>
    %c0_108 = arith.constant 0 : index
    %c128_109 = arith.constant 128 : index
    %282 = vector.load %arg7[%c0_108, %c128_109] : memref<2x512xf32, #tpu.memory_space<vmem>>, vector<1x256xf32>
    %c1_110 = arith.constant 1 : index
    %c128_111 = arith.constant 128 : index
    %283 = vector.load %arg7[%c1_110, %c128_111] : memref<2x512xf32, #tpu.memory_space<vmem>>, vector<1x256xf32>
    %c24 = arith.constant 24 : index
    %284 = memref.load %arg5[%c24] : memref<99xf32, #tpu.memory_space<smem>>
    %285 = vector.broadcast %284 : f32 to vector<1x256xf32>
    %286 = arith.mulf %285, %282 : vector<1x256xf32>
    %c73 = arith.constant 73 : index
    %287 = memref.load %arg5[%c73] : memref<99xf32, #tpu.memory_space<smem>>
    %288 = vector.broadcast %287 : f32 to vector<1x256xf32>
    %289 = arith.mulf %288, %283 : vector<1x256xf32>
    %290 = arith.addf %286, %289 : vector<1x256xf32>
    %291 = arith.addf %281, %290 : vector<1x256xf32>
    %c0_112 = arith.constant 0 : index
    %c144 = arith.constant 144 : index
    %292 = vector.load %arg7[%c0_112, %c144] : memref<2x512xf32, #tpu.memory_space<vmem>>, vector<1x256xf32>
    %c1_113 = arith.constant 1 : index
    %c144_114 = arith.constant 144 : index
    %293 = vector.load %arg7[%c1_113, %c144_114] : memref<2x512xf32, #tpu.memory_space<vmem>>, vector<1x256xf32>
    %c31 = arith.constant 31 : index
    %294 = memref.load %arg5[%c31] : memref<99xf32, #tpu.memory_space<smem>>
    %295 = vector.broadcast %294 : f32 to vector<1x256xf32>
    %296 = arith.mulf %295, %292 : vector<1x256xf32>
    %c80_115 = arith.constant 80 : index
    %297 = memref.load %arg5[%c80_115] : memref<99xf32, #tpu.memory_space<smem>>
    %298 = vector.broadcast %297 : f32 to vector<1x256xf32>
    %299 = arith.mulf %298, %293 : vector<1x256xf32>
    %300 = arith.addf %296, %299 : vector<1x256xf32>
    %301 = arith.addf %291, %300 : vector<1x256xf32>
    %c0_116 = arith.constant 0 : index
    %c160 = arith.constant 160 : index
    %302 = vector.load %arg7[%c0_116, %c160] : memref<2x512xf32, #tpu.memory_space<vmem>>, vector<1x256xf32>
    %c1_117 = arith.constant 1 : index
    %c160_118 = arith.constant 160 : index
    %303 = vector.load %arg7[%c1_117, %c160_118] : memref<2x512xf32, #tpu.memory_space<vmem>>, vector<1x256xf32>
    %c38 = arith.constant 38 : index
    %304 = memref.load %arg5[%c38] : memref<99xf32, #tpu.memory_space<smem>>
    %305 = vector.broadcast %304 : f32 to vector<1x256xf32>
    %306 = arith.mulf %305, %302 : vector<1x256xf32>
    %c87 = arith.constant 87 : index
    %307 = memref.load %arg5[%c87] : memref<99xf32, #tpu.memory_space<smem>>
    %308 = vector.broadcast %307 : f32 to vector<1x256xf32>
    %309 = arith.mulf %308, %303 : vector<1x256xf32>
    %310 = arith.addf %306, %309 : vector<1x256xf32>
    %311 = arith.addf %301, %310 : vector<1x256xf32>
    %c0_119 = arith.constant 0 : index
    %c176 = arith.constant 176 : index
    %312 = vector.load %arg7[%c0_119, %c176] : memref<2x512xf32, #tpu.memory_space<vmem>>, vector<1x256xf32>
    %c1_120 = arith.constant 1 : index
    %c176_121 = arith.constant 176 : index
    %313 = vector.load %arg7[%c1_120, %c176_121] : memref<2x512xf32, #tpu.memory_space<vmem>>, vector<1x256xf32>
    %c45 = arith.constant 45 : index
    %314 = memref.load %arg5[%c45] : memref<99xf32, #tpu.memory_space<smem>>
    %315 = vector.broadcast %314 : f32 to vector<1x256xf32>
    %316 = arith.mulf %315, %312 : vector<1x256xf32>
    %c94_122 = arith.constant 94 : index
    %317 = memref.load %arg5[%c94_122] : memref<99xf32, #tpu.memory_space<smem>>
    %318 = vector.broadcast %317 : f32 to vector<1x256xf32>
    %319 = arith.mulf %318, %313 : vector<1x256xf32>
    %320 = arith.addf %316, %319 : vector<1x256xf32>
    %321 = arith.addf %311, %320 : vector<1x256xf32>
    %c3_123 = arith.constant 3 : index
    %c0_124 = arith.constant 0 : index
    %322 = vector.load %arg4[%c3_123, %c0_124] : memref<7x256xf32, #tpu.memory_space<vmem>>, vector<1x256xf32>
    %323 = arith.mulf %322, %321 : vector<1x256xf32>
    %324 = arith.addf %252, %323 : vector<1x256xf32>
    %c0_125 = arith.constant 0 : index
    %c81 = arith.constant 81 : index
    %325 = vector.load %arg7[%c0_125, %c81] : memref<2x512xf32, #tpu.memory_space<vmem>>, vector<1x256xf32>
    %c1_126 = arith.constant 1 : index
    %c81_127 = arith.constant 81 : index
    %326 = vector.load %arg7[%c1_126, %c81_127] : memref<2x512xf32, #tpu.memory_space<vmem>>, vector<1x256xf32>
    %c4 = arith.constant 4 : index
    %327 = memref.load %arg5[%c4] : memref<99xf32, #tpu.memory_space<smem>>
    %328 = vector.broadcast %327 : f32 to vector<1x256xf32>
    %329 = arith.mulf %328, %325 : vector<1x256xf32>
    %c53 = arith.constant 53 : index
    %330 = memref.load %arg5[%c53] : memref<99xf32, #tpu.memory_space<smem>>
    %331 = vector.broadcast %330 : f32 to vector<1x256xf32>
    %332 = arith.mulf %331, %326 : vector<1x256xf32>
    %333 = arith.addf %329, %332 : vector<1x256xf32>
    %c0_128 = arith.constant 0 : index
    %c97 = arith.constant 97 : index
    %334 = vector.load %arg7[%c0_128, %c97] : memref<2x512xf32, #tpu.memory_space<vmem>>, vector<1x256xf32>
    %c1_129 = arith.constant 1 : index
    %c97_130 = arith.constant 97 : index
    %335 = vector.load %arg7[%c1_129, %c97_130] : memref<2x512xf32, #tpu.memory_space<vmem>>, vector<1x256xf32>
    %c11 = arith.constant 11 : index
    %336 = memref.load %arg5[%c11] : memref<99xf32, #tpu.memory_space<smem>>
    %337 = vector.broadcast %336 : f32 to vector<1x256xf32>
    %338 = arith.mulf %337, %334 : vector<1x256xf32>
    %c60 = arith.constant 60 : index
    %339 = memref.load %arg5[%c60] : memref<99xf32, #tpu.memory_space<smem>>
    %340 = vector.broadcast %339 : f32 to vector<1x256xf32>
    %341 = arith.mulf %340, %335 : vector<1x256xf32>
    %342 = arith.addf %338, %341 : vector<1x256xf32>
    %343 = arith.addf %333, %342 : vector<1x256xf32>
    %c0_131 = arith.constant 0 : index
    %c113 = arith.constant 113 : index
    %344 = vector.load %arg7[%c0_131, %c113] : memref<2x512xf32, #tpu.memory_space<vmem>>, vector<1x256xf32>
    %c1_132 = arith.constant 1 : index
    %c113_133 = arith.constant 113 : index
    %345 = vector.load %arg7[%c1_132, %c113_133] : memref<2x512xf32, #tpu.memory_space<vmem>>, vector<1x256xf32>
    %c18 = arith.constant 18 : index
    %346 = memref.load %arg5[%c18] : memref<99xf32, #tpu.memory_space<smem>>
    %347 = vector.broadcast %346 : f32 to vector<1x256xf32>
    %348 = arith.mulf %347, %344 : vector<1x256xf32>
    %c67 = arith.constant 67 : index
    %349 = memref.load %arg5[%c67] : memref<99xf32, #tpu.memory_space<smem>>
    %350 = vector.broadcast %349 : f32 to vector<1x256xf32>
    %351 = arith.mulf %350, %345 : vector<1x256xf32>
    %352 = arith.addf %348, %351 : vector<1x256xf32>
    %353 = arith.addf %343, %352 : vector<1x256xf32>
    %c0_134 = arith.constant 0 : index
    %c129 = arith.constant 129 : index
    %354 = vector.load %arg7[%c0_134, %c129] : memref<2x512xf32, #tpu.memory_space<vmem>>, vector<1x256xf32>
    %c1_135 = arith.constant 1 : index
    %c129_136 = arith.constant 129 : index
    %355 = vector.load %arg7[%c1_135, %c129_136] : memref<2x512xf32, #tpu.memory_space<vmem>>, vector<1x256xf32>
    %c25 = arith.constant 25 : index
    %356 = memref.load %arg5[%c25] : memref<99xf32, #tpu.memory_space<smem>>
    %357 = vector.broadcast %356 : f32 to vector<1x256xf32>
    %358 = arith.mulf %357, %354 : vector<1x256xf32>
    %c74 = arith.constant 74 : index
    %359 = memref.load %arg5[%c74] : memref<99xf32, #tpu.memory_space<smem>>
    %360 = vector.broadcast %359 : f32 to vector<1x256xf32>
    %361 = arith.mulf %360, %355 : vector<1x256xf32>
    %362 = arith.addf %358, %361 : vector<1x256xf32>
    %363 = arith.addf %353, %362 : vector<1x256xf32>
    %c0_137 = arith.constant 0 : index
    %c145 = arith.constant 145 : index
    %364 = vector.load %arg7[%c0_137, %c145] : memref<2x512xf32, #tpu.memory_space<vmem>>, vector<1x256xf32>
    %c1_138 = arith.constant 1 : index
    %c145_139 = arith.constant 145 : index
    %365 = vector.load %arg7[%c1_138, %c145_139] : memref<2x512xf32, #tpu.memory_space<vmem>>, vector<1x256xf32>
    %c32 = arith.constant 32 : index
    %366 = memref.load %arg5[%c32] : memref<99xf32, #tpu.memory_space<smem>>
    %367 = vector.broadcast %366 : f32 to vector<1x256xf32>
    %368 = arith.mulf %367, %364 : vector<1x256xf32>
    %c81_140 = arith.constant 81 : index
    %369 = memref.load %arg5[%c81_140] : memref<99xf32, #tpu.memory_space<smem>>
    %370 = vector.broadcast %369 : f32 to vector<1x256xf32>
    %371 = arith.mulf %370, %365 : vector<1x256xf32>
    %372 = arith.addf %368, %371 : vector<1x256xf32>
    %373 = arith.addf %363, %372 : vector<1x256xf32>
    %c0_141 = arith.constant 0 : index
    %c161 = arith.constant 161 : index
    %374 = vector.load %arg7[%c0_141, %c161] : memref<2x512xf32, #tpu.memory_space<vmem>>, vector<1x256xf32>
    %c1_142 = arith.constant 1 : index
    %c161_143 = arith.constant 161 : index
    %375 = vector.load %arg7[%c1_142, %c161_143] : memref<2x512xf32, #tpu.memory_space<vmem>>, vector<1x256xf32>
    %c39 = arith.constant 39 : index
    %376 = memref.load %arg5[%c39] : memref<99xf32, #tpu.memory_space<smem>>
    %377 = vector.broadcast %376 : f32 to vector<1x256xf32>
    %378 = arith.mulf %377, %374 : vector<1x256xf32>
    %c88 = arith.constant 88 : index
    %379 = memref.load %arg5[%c88] : memref<99xf32, #tpu.memory_space<smem>>
    %380 = vector.broadcast %379 : f32 to vector<1x256xf32>
    %381 = arith.mulf %380, %375 : vector<1x256xf32>
    %382 = arith.addf %378, %381 : vector<1x256xf32>
    %383 = arith.addf %373, %382 : vector<1x256xf32>
    %c0_144 = arith.constant 0 : index
    %c177 = arith.constant 177 : index
    %384 = vector.load %arg7[%c0_144, %c177] : memref<2x512xf32, #tpu.memory_space<vmem>>, vector<1x256xf32>
    %c1_145 = arith.constant 1 : index
    %c177_146 = arith.constant 177 : index
    %385 = vector.load %arg7[%c1_145, %c177_146] : memref<2x512xf32, #tpu.memory_space<vmem>>, vector<1x256xf32>
    %c46 = arith.constant 46 : index
    %386 = memref.load %arg5[%c46] : memref<99xf32, #tpu.memory_space<smem>>
    %387 = vector.broadcast %386 : f32 to vector<1x256xf32>
    %388 = arith.mulf %387, %384 : vector<1x256xf32>
    %c95_147 = arith.constant 95 : index
    %389 = memref.load %arg5[%c95_147] : memref<99xf32, #tpu.memory_space<smem>>
    %390 = vector.broadcast %389 : f32 to vector<1x256xf32>
    %391 = arith.mulf %390, %385 : vector<1x256xf32>
    %392 = arith.addf %388, %391 : vector<1x256xf32>
    %393 = arith.addf %383, %392 : vector<1x256xf32>
    %c4_148 = arith.constant 4 : index
    %c0_149 = arith.constant 0 : index
    %394 = vector.load %arg4[%c4_148, %c0_149] : memref<7x256xf32, #tpu.memory_space<vmem>>, vector<1x256xf32>
    %395 = arith.mulf %394, %393 : vector<1x256xf32>
    %396 = arith.addf %324, %395 : vector<1x256xf32>
    %c0_150 = arith.constant 0 : index
    %c82 = arith.constant 82 : index
    %397 = vector.load %arg7[%c0_150, %c82] : memref<2x512xf32, #tpu.memory_space<vmem>>, vector<1x256xf32>
    %c1_151 = arith.constant 1 : index
    %c82_152 = arith.constant 82 : index
    %398 = vector.load %arg7[%c1_151, %c82_152] : memref<2x512xf32, #tpu.memory_space<vmem>>, vector<1x256xf32>
    %c5 = arith.constant 5 : index
    %399 = memref.load %arg5[%c5] : memref<99xf32, #tpu.memory_space<smem>>
    %400 = vector.broadcast %399 : f32 to vector<1x256xf32>
    %401 = arith.mulf %400, %397 : vector<1x256xf32>
    %c54 = arith.constant 54 : index
    %402 = memref.load %arg5[%c54] : memref<99xf32, #tpu.memory_space<smem>>
    %403 = vector.broadcast %402 : f32 to vector<1x256xf32>
    %404 = arith.mulf %403, %398 : vector<1x256xf32>
    %405 = arith.addf %401, %404 : vector<1x256xf32>
    %c0_153 = arith.constant 0 : index
    %c98 = arith.constant 98 : index
    %406 = vector.load %arg7[%c0_153, %c98] : memref<2x512xf32, #tpu.memory_space<vmem>>, vector<1x256xf32>
    %c1_154 = arith.constant 1 : index
    %c98_155 = arith.constant 98 : index
    %407 = vector.load %arg7[%c1_154, %c98_155] : memref<2x512xf32, #tpu.memory_space<vmem>>, vector<1x256xf32>
    %c12 = arith.constant 12 : index
    %408 = memref.load %arg5[%c12] : memref<99xf32, #tpu.memory_space<smem>>
    %409 = vector.broadcast %408 : f32 to vector<1x256xf32>
    %410 = arith.mulf %409, %406 : vector<1x256xf32>
    %c61 = arith.constant 61 : index
    %411 = memref.load %arg5[%c61] : memref<99xf32, #tpu.memory_space<smem>>
    %412 = vector.broadcast %411 : f32 to vector<1x256xf32>
    %413 = arith.mulf %412, %407 : vector<1x256xf32>
    %414 = arith.addf %410, %413 : vector<1x256xf32>
    %415 = arith.addf %405, %414 : vector<1x256xf32>
    %c0_156 = arith.constant 0 : index
    %c114 = arith.constant 114 : index
    %416 = vector.load %arg7[%c0_156, %c114] : memref<2x512xf32, #tpu.memory_space<vmem>>, vector<1x256xf32>
    %c1_157 = arith.constant 1 : index
    %c114_158 = arith.constant 114 : index
    %417 = vector.load %arg7[%c1_157, %c114_158] : memref<2x512xf32, #tpu.memory_space<vmem>>, vector<1x256xf32>
    %c19 = arith.constant 19 : index
    %418 = memref.load %arg5[%c19] : memref<99xf32, #tpu.memory_space<smem>>
    %419 = vector.broadcast %418 : f32 to vector<1x256xf32>
    %420 = arith.mulf %419, %416 : vector<1x256xf32>
    %c68 = arith.constant 68 : index
    %421 = memref.load %arg5[%c68] : memref<99xf32, #tpu.memory_space<smem>>
    %422 = vector.broadcast %421 : f32 to vector<1x256xf32>
    %423 = arith.mulf %422, %417 : vector<1x256xf32>
    %424 = arith.addf %420, %423 : vector<1x256xf32>
    %425 = arith.addf %415, %424 : vector<1x256xf32>
    %c0_159 = arith.constant 0 : index
    %c130 = arith.constant 130 : index
    %426 = vector.load %arg7[%c0_159, %c130] : memref<2x512xf32, #tpu.memory_space<vmem>>, vector<1x256xf32>
    %c1_160 = arith.constant 1 : index
    %c130_161 = arith.constant 130 : index
    %427 = vector.load %arg7[%c1_160, %c130_161] : memref<2x512xf32, #tpu.memory_space<vmem>>, vector<1x256xf32>
    %c26 = arith.constant 26 : index
    %428 = memref.load %arg5[%c26] : memref<99xf32, #tpu.memory_space<smem>>
    %429 = vector.broadcast %428 : f32 to vector<1x256xf32>
    %430 = arith.mulf %429, %426 : vector<1x256xf32>
    %c75 = arith.constant 75 : index
    %431 = memref.load %arg5[%c75] : memref<99xf32, #tpu.memory_space<smem>>
    %432 = vector.broadcast %431 : f32 to vector<1x256xf32>
    %433 = arith.mulf %432, %427 : vector<1x256xf32>
    %434 = arith.addf %430, %433 : vector<1x256xf32>
    %435 = arith.addf %425, %434 : vector<1x256xf32>
    %c0_162 = arith.constant 0 : index
    %c146 = arith.constant 146 : index
    %436 = vector.load %arg7[%c0_162, %c146] : memref<2x512xf32, #tpu.memory_space<vmem>>, vector<1x256xf32>
    %c1_163 = arith.constant 1 : index
    %c146_164 = arith.constant 146 : index
    %437 = vector.load %arg7[%c1_163, %c146_164] : memref<2x512xf32, #tpu.memory_space<vmem>>, vector<1x256xf32>
    %c33 = arith.constant 33 : index
    %438 = memref.load %arg5[%c33] : memref<99xf32, #tpu.memory_space<smem>>
    %439 = vector.broadcast %438 : f32 to vector<1x256xf32>
    %440 = arith.mulf %439, %436 : vector<1x256xf32>
    %c82_165 = arith.constant 82 : index
    %441 = memref.load %arg5[%c82_165] : memref<99xf32, #tpu.memory_space<smem>>
    %442 = vector.broadcast %441 : f32 to vector<1x256xf32>
    %443 = arith.mulf %442, %437 : vector<1x256xf32>
    %444 = arith.addf %440, %443 : vector<1x256xf32>
    %445 = arith.addf %435, %444 : vector<1x256xf32>
    %c0_166 = arith.constant 0 : index
    %c162 = arith.constant 162 : index
    %446 = vector.load %arg7[%c0_166, %c162] : memref<2x512xf32, #tpu.memory_space<vmem>>, vector<1x256xf32>
    %c1_167 = arith.constant 1 : index
    %c162_168 = arith.constant 162 : index
    %447 = vector.load %arg7[%c1_167, %c162_168] : memref<2x512xf32, #tpu.memory_space<vmem>>, vector<1x256xf32>
    %c40 = arith.constant 40 : index
    %448 = memref.load %arg5[%c40] : memref<99xf32, #tpu.memory_space<smem>>
    %449 = vector.broadcast %448 : f32 to vector<1x256xf32>
    %450 = arith.mulf %449, %446 : vector<1x256xf32>
    %c89 = arith.constant 89 : index
    %451 = memref.load %arg5[%c89] : memref<99xf32, #tpu.memory_space<smem>>
    %452 = vector.broadcast %451 : f32 to vector<1x256xf32>
    %453 = arith.mulf %452, %447 : vector<1x256xf32>
    %454 = arith.addf %450, %453 : vector<1x256xf32>
    %455 = arith.addf %445, %454 : vector<1x256xf32>
    %c0_169 = arith.constant 0 : index
    %c178 = arith.constant 178 : index
    %456 = vector.load %arg7[%c0_169, %c178] : memref<2x512xf32, #tpu.memory_space<vmem>>, vector<1x256xf32>
    %c1_170 = arith.constant 1 : index
    %c178_171 = arith.constant 178 : index
    %457 = vector.load %arg7[%c1_170, %c178_171] : memref<2x512xf32, #tpu.memory_space<vmem>>, vector<1x256xf32>
    %c47 = arith.constant 47 : index
    %458 = memref.load %arg5[%c47] : memref<99xf32, #tpu.memory_space<smem>>
    %459 = vector.broadcast %458 : f32 to vector<1x256xf32>
    %460 = arith.mulf %459, %456 : vector<1x256xf32>
    %c96_172 = arith.constant 96 : index
    %461 = memref.load %arg5[%c96_172] : memref<99xf32, #tpu.memory_space<smem>>
    %462 = vector.broadcast %461 : f32 to vector<1x256xf32>
    %463 = arith.mulf %462, %457 : vector<1x256xf32>
    %464 = arith.addf %460, %463 : vector<1x256xf32>
    %465 = arith.addf %455, %464 : vector<1x256xf32>
    %c5_173 = arith.constant 5 : index
    %c0_174 = arith.constant 0 : index
    %466 = vector.load %arg4[%c5_173, %c0_174] : memref<7x256xf32, #tpu.memory_space<vmem>>, vector<1x256xf32>
    %467 = arith.mulf %466, %465 : vector<1x256xf32>
    %468 = arith.addf %396, %467 : vector<1x256xf32>
    %c0_175 = arith.constant 0 : index
    %c83 = arith.constant 83 : index
    %469 = vector.load %arg7[%c0_175, %c83] : memref<2x512xf32, #tpu.memory_space<vmem>>, vector<1x256xf32>
    %c1_176 = arith.constant 1 : index
    %c83_177 = arith.constant 83 : index
    %470 = vector.load %arg7[%c1_176, %c83_177] : memref<2x512xf32, #tpu.memory_space<vmem>>, vector<1x256xf32>
    %c6 = arith.constant 6 : index
    %471 = memref.load %arg5[%c6] : memref<99xf32, #tpu.memory_space<smem>>
    %472 = vector.broadcast %471 : f32 to vector<1x256xf32>
    %473 = arith.mulf %472, %469 : vector<1x256xf32>
    %c55 = arith.constant 55 : index
    %474 = memref.load %arg5[%c55] : memref<99xf32, #tpu.memory_space<smem>>
    %475 = vector.broadcast %474 : f32 to vector<1x256xf32>
    %476 = arith.mulf %475, %470 : vector<1x256xf32>
    %477 = arith.addf %473, %476 : vector<1x256xf32>
    %c0_178 = arith.constant 0 : index
    %c99 = arith.constant 99 : index
    %478 = vector.load %arg7[%c0_178, %c99] : memref<2x512xf32, #tpu.memory_space<vmem>>, vector<1x256xf32>
    %c1_179 = arith.constant 1 : index
    %c99_180 = arith.constant 99 : index
    %479 = vector.load %arg7[%c1_179, %c99_180] : memref<2x512xf32, #tpu.memory_space<vmem>>, vector<1x256xf32>
    %c13 = arith.constant 13 : index
    %480 = memref.load %arg5[%c13] : memref<99xf32, #tpu.memory_space<smem>>
    %481 = vector.broadcast %480 : f32 to vector<1x256xf32>
    %482 = arith.mulf %481, %478 : vector<1x256xf32>
    %c62 = arith.constant 62 : index
    %483 = memref.load %arg5[%c62] : memref<99xf32, #tpu.memory_space<smem>>
    %484 = vector.broadcast %483 : f32 to vector<1x256xf32>
    %485 = arith.mulf %484, %479 : vector<1x256xf32>
    %486 = arith.addf %482, %485 : vector<1x256xf32>
    %487 = arith.addf %477, %486 : vector<1x256xf32>
    %c0_181 = arith.constant 0 : index
    %c115 = arith.constant 115 : index
    %488 = vector.load %arg7[%c0_181, %c115] : memref<2x512xf32, #tpu.memory_space<vmem>>, vector<1x256xf32>
    %c1_182 = arith.constant 1 : index
    %c115_183 = arith.constant 115 : index
    %489 = vector.load %arg7[%c1_182, %c115_183] : memref<2x512xf32, #tpu.memory_space<vmem>>, vector<1x256xf32>
    %c20 = arith.constant 20 : index
    %490 = memref.load %arg5[%c20] : memref<99xf32, #tpu.memory_space<smem>>
    %491 = vector.broadcast %490 : f32 to vector<1x256xf32>
    %492 = arith.mulf %491, %488 : vector<1x256xf32>
    %c69 = arith.constant 69 : index
    %493 = memref.load %arg5[%c69] : memref<99xf32, #tpu.memory_space<smem>>
    %494 = vector.broadcast %493 : f32 to vector<1x256xf32>
    %495 = arith.mulf %494, %489 : vector<1x256xf32>
    %496 = arith.addf %492, %495 : vector<1x256xf32>
    %497 = arith.addf %487, %496 : vector<1x256xf32>
    %c0_184 = arith.constant 0 : index
    %c131 = arith.constant 131 : index
    %498 = vector.load %arg7[%c0_184, %c131] : memref<2x512xf32, #tpu.memory_space<vmem>>, vector<1x256xf32>
    %c1_185 = arith.constant 1 : index
    %c131_186 = arith.constant 131 : index
    %499 = vector.load %arg7[%c1_185, %c131_186] : memref<2x512xf32, #tpu.memory_space<vmem>>, vector<1x256xf32>
    %c27 = arith.constant 27 : index
    %500 = memref.load %arg5[%c27] : memref<99xf32, #tpu.memory_space<smem>>
    %501 = vector.broadcast %500 : f32 to vector<1x256xf32>
    %502 = arith.mulf %501, %498 : vector<1x256xf32>
    %c76 = arith.constant 76 : index
    %503 = memref.load %arg5[%c76] : memref<99xf32, #tpu.memory_space<smem>>
    %504 = vector.broadcast %503 : f32 to vector<1x256xf32>
    %505 = arith.mulf %504, %499 : vector<1x256xf32>
    %506 = arith.addf %502, %505 : vector<1x256xf32>
    %507 = arith.addf %497, %506 : vector<1x256xf32>
    %c0_187 = arith.constant 0 : index
    %c147 = arith.constant 147 : index
    %508 = vector.load %arg7[%c0_187, %c147] : memref<2x512xf32, #tpu.memory_space<vmem>>, vector<1x256xf32>
    %c1_188 = arith.constant 1 : index
    %c147_189 = arith.constant 147 : index
    %509 = vector.load %arg7[%c1_188, %c147_189] : memref<2x512xf32, #tpu.memory_space<vmem>>, vector<1x256xf32>
    %c34 = arith.constant 34 : index
    %510 = memref.load %arg5[%c34] : memref<99xf32, #tpu.memory_space<smem>>
    %511 = vector.broadcast %510 : f32 to vector<1x256xf32>
    %512 = arith.mulf %511, %508 : vector<1x256xf32>
    %c83_190 = arith.constant 83 : index
    %513 = memref.load %arg5[%c83_190] : memref<99xf32, #tpu.memory_space<smem>>
    %514 = vector.broadcast %513 : f32 to vector<1x256xf32>
    %515 = arith.mulf %514, %509 : vector<1x256xf32>
    %516 = arith.addf %512, %515 : vector<1x256xf32>
    %517 = arith.addf %507, %516 : vector<1x256xf32>
    %c0_191 = arith.constant 0 : index
    %c163 = arith.constant 163 : index
    %518 = vector.load %arg7[%c0_191, %c163] : memref<2x512xf32, #tpu.memory_space<vmem>>, vector<1x256xf32>
    %c1_192 = arith.constant 1 : index
    %c163_193 = arith.constant 163 : index
    %519 = vector.load %arg7[%c1_192, %c163_193] : memref<2x512xf32, #tpu.memory_space<vmem>>, vector<1x256xf32>
    %c41 = arith.constant 41 : index
    %520 = memref.load %arg5[%c41] : memref<99xf32, #tpu.memory_space<smem>>
    %521 = vector.broadcast %520 : f32 to vector<1x256xf32>
    %522 = arith.mulf %521, %518 : vector<1x256xf32>
    %c90 = arith.constant 90 : index
    %523 = memref.load %arg5[%c90] : memref<99xf32, #tpu.memory_space<smem>>
    %524 = vector.broadcast %523 : f32 to vector<1x256xf32>
    %525 = arith.mulf %524, %519 : vector<1x256xf32>
    %526 = arith.addf %522, %525 : vector<1x256xf32>
    %527 = arith.addf %517, %526 : vector<1x256xf32>
    %c0_194 = arith.constant 0 : index
    %c179 = arith.constant 179 : index
    %528 = vector.load %arg7[%c0_194, %c179] : memref<2x512xf32, #tpu.memory_space<vmem>>, vector<1x256xf32>
    %c1_195 = arith.constant 1 : index
    %c179_196 = arith.constant 179 : index
    %529 = vector.load %arg7[%c1_195, %c179_196] : memref<2x512xf32, #tpu.memory_space<vmem>>, vector<1x256xf32>
    %c48 = arith.constant 48 : index
    %530 = memref.load %arg5[%c48] : memref<99xf32, #tpu.memory_space<smem>>
    %531 = vector.broadcast %530 : f32 to vector<1x256xf32>
    %532 = arith.mulf %531, %528 : vector<1x256xf32>
    %c97_197 = arith.constant 97 : index
    %533 = memref.load %arg5[%c97_197] : memref<99xf32, #tpu.memory_space<smem>>
    %534 = vector.broadcast %533 : f32 to vector<1x256xf32>
    %535 = arith.mulf %534, %529 : vector<1x256xf32>
    %536 = arith.addf %532, %535 : vector<1x256xf32>
    %537 = arith.addf %527, %536 : vector<1x256xf32>
    %c6_198 = arith.constant 6 : index
    %c0_199 = arith.constant 0 : index
    %538 = vector.load %arg4[%c6_198, %c0_199] : memref<7x256xf32, #tpu.memory_space<vmem>>, vector<1x256xf32>
    %539 = arith.mulf %538, %537 : vector<1x256xf32>
    %540 = arith.addf %468, %539 : vector<1x256xf32>
    %c98_200 = arith.constant 98 : index
    %541 = memref.load %arg5[%c98_200] : memref<99xf32, #tpu.memory_space<smem>>
    %542 = vector.broadcast %541 : f32 to vector<1x256xf32>
    %543 = arith.addf %540, %542 : vector<1x256xf32>
    %544 = arith.negf %543 : vector<1x256xf32>
    %545 = math.exp %544 : vector<1x256xf32>
    %cst_201 = arith.constant 1.000000e+00 : f32
    %546 = vector.broadcast %cst_201 : f32 to vector<1x256xf32>
    %547 = arith.addf %546, %545 : vector<1x256xf32>
    %548 = arith.divf %546, %547 : vector<1x256xf32>
    %549 = vector.broadcast %548 : vector<1x256xf32> to vector<32x256xf32>
    %550 = arith.mulf %24, %549 : vector<32x256xf32>
    %c0_202 = arith.constant 0 : index
    %c0_203 = arith.constant 0 : index
    %c0_204 = arith.constant 0 : index
    %551 = vector.load %arg6[%c0_202, %c0_203, %c0_204] : memref<1x32x256xf32, #tpu.memory_space<vmem>>, vector<1x32x256xf32>
    %552 = vector.shape_cast %551 : vector<1x32x256xf32> to vector<32x256xf32>
    %553 = vector.shape_cast %550 : vector<32x256xf32> to vector<1x32x256xf32>
    tpu.vector_store %arg6[%c0_202, %c0_203, %c0_204], %553 {strides = array<i32>} : memref<1x32x256xf32, #tpu.memory_space<vmem>>, vector<1x32x256xf32>,
    return
  }
  func.func @transform_0(%arg0: i32) -> (i32, i32, i32) {
    %c0_i32 = arith.constant 0 : i32
    %c0_i32_0 = arith.constant 0 : i32
    %c0_i32_1 = arith.constant 0 : i32
    return %arg0, %c0_i32, %c0_i32_0 : i32, i32, i32
  }
  func.func @transform_1(%arg0: i32) -> (i32, i32) {
    %c0_i32 = arith.constant 0 : i32
    %c0_i32_0 = arith.constant 0 : i32
    %c0_i32_1 = arith.constant 0 : i32
    return %c0_i32, %c0_i32_0 : i32, i32
  }
  func.func @transform_2(%arg0: i32) -> (i32, i32) {
    %c0_i32 = arith.constant 0 : i32
    %c0_i32_0 = arith.constant 0 : i32
    %c0_i32_1 = arith.constant 0 : i32
    return %c0_i32, %c0_i32_0 : i32, i32
  }
  func.func @transform_3(%arg0: i32) -> (i32, i32) {
    %c0_i32 = arith.constant 0 : i32
    %c0_i32_0 = arith.constant 0 : i32
    %c0_i32_1 = arith.constant 0 : i32
    return %c0_i32, %c0_i32_0 : i32, i32
  }
  func.func @transform_4(%arg0: i32) -> i32 {
    %c0_i32 = arith.constant 0 : i32
    %c0_i32_0 = arith.constant 0 : i32
    return %c0_i32 : i32
  }
  func.func @transform_5(%arg0: i32) -> (i32, i32, i32) {
    %c0_i32 = arith.constant 0 : i32
    %c0_i32_0 = arith.constant 0 : i32
    %c0_i32_1 = arith.constant 0 : i32
    return %arg0, %c0_i32, %c0_i32_0 : i32, i32, i32
  }
}

</mosaic_0001>

<llo_original>
// kernel: refm_forward.1
$region0: #{refm_forward.1}
  #allocation0 [shape = 'u32[]', space=smem, size = 0x4, offset = 0x4, fixed_abs, tag = 'smem constant byte address 0x4 - core index']
  #allocation1 [shape = 'u32[144,128]{1,0:T(1,128)}', space=vmem, size = 0x12000, scoped, tag = 'internal scratch']
  #allocation2 [shape = 'f32[2,512]{1,0:T(2,128)}', space=vmem, size = 0x1000, scoped, tag = 'scratch operand']
  %s0 = inlined_call_operand.vmem [shape: f32[2,32,256], index: 0, kind: input, shape index: {}]
  %s1 = inlined_call_operand.vmem [shape: f32[2,32], index: 1, kind: input, shape index: {}]
  %s2 = inlined_call_operand.vmem [shape: f32[32,2], index: 2, kind: input, shape index: {}]
  %s3 = inlined_call_operand.vmem [shape: f32[7,256], index: 3, kind: input, shape index: {}]
  %s4 = inlined_call_operand.vmem [shape: f32[99], index: 4, kind: input, shape index: {}]
  %s5 = inlined_call_operand.vmem [shape: f32[2,32,256], index: 5, kind: output, shape index: {}]
  %s6 = sld [smem:[#allocation0]]
  $region57: #{refm_forward.1} parent=0
    _
  %s8 = ssub.s32 1, %s6
  %s9 = scalar_select 0, %s8, %s6
  $region1: #{refm_forward.1} parent=0
    #allocation3 [shape = 'u8[512]{0}', space=smem, size = 0x200, scoped, tag = 'input window, operand 4, single buffered']
    #allocation4 [shape = 's32[2]{0}', space=sflag, size = 0x8, scoped, tag = 'scoped memory for refm_forward.1']
    %10 = vsyncpa [#allocation4], 0
    loop: start=0, step=1, limit=4
    $region2: #{refm_forward.1} parent=1 // loop_pre_header
      _
    $region3: #{refm_forward.1} parent=1 // loop_header
      %s12 = sphi 0, %s16
      %p13 = scmp.ge.s32.totalorder %s12, 4
      %s22 = sphi 0, %s24
      %s25 = sphi 0, %s22
      %s26 = sphi 0, %s25
      %s42 = sphi 0, %s26
      %s46 = sphi 0, %s46
      %s48 = sphi 0, %s46
      %s49 = sphi 0, %s48
      %s63 = sphi 0, %s49
      %s67 = sphi 0, %s67
      %s69 = sphi 0, %s67
      %s70 = sphi 0, %s69
      %s84 = sphi 0, %s70
      %s88 = sphi 0, %s88
      %s90 = sphi 0, %s88
      %s91 = sphi 0, %s90
      %s105 = sphi 0, %s91
      %s109 = sphi 0, %s109
      %s111 = sphi 0, %s109
      %s112 = sphi 0, %s111
      %s126 = sphi 0, %s112
      %s132 = sphi 0, %s134
      %s135 = sphi 0, %s132
      %s136 = sphi 0, %s135
      %s152 = sphi 0, %s136
    $region4: #{refm_forward.1} parent=1 // loop_header_branch
      %15 = sbr.rel (%p13) target = $region8
    $region5: #{refm_forward.1} parent=1 // loop_body
      %s17 = ssub.s32 %s12, 1
      %s18 = ssub.s32 %s12, 2
      %s19 = sadd.s32 %s12, 1
      %s20 = ssub.s32 %s12, %s19
      %p21 = scmp.eq.s32.totalorder %s20, 0
      %s23 = sadd.s32 %s22, 1
      %s24 = scalar_select %p21, %s22, %s23
      %p27 = pneg %p21
      %p28 = scmp.eq.s32.totalorder %s12, 1
      %p29 = por %p27, %p28
      %p30 = scmp.ne.s32.totalorder %s22, %s25
      %p31 = scmp.eq.s32.totalorder %s12, 0
      %p32 = por %p30, %p31
      %p33 = scmp.ne.s32.totalorder %s22, %s25
      %p34 = scmp.eq.s32.totalorder %s17, 1
      %p35 = por %p33, %p34
      %p36 = scmp.ne.s32.totalorder %s25, %s26
      %p37 = scmp.eq.s32.totalorder %s17, 0
      %p38 = por %p36, %p37
      %p39 = scmp.ne.s32.totalorder %s25, %s26
      %p40 = scmp.eq.s32.totalorder %s18, 1
      %p41 = por %p39, %p40
      %p43 = scmp.ne.s32.totalorder %s26, %s42
      %p44 = scmp.eq.s32.totalorder %s18, 0
      %p45 = por %p43, %p44
      %s47 = sadd.s32 %s46, 1
      %p50 = scmp.eq.s32.totalorder %s12, 1
      %p51 = scmp.ne.s32.totalorder %s46, %s48
      %p52 = scmp.eq.s32.totalorder %s12, 0
      %p53 = por %p51, %p52
      %p54 = scmp.ne.s32.totalorder %s46, %s48
      %p55 = scmp.eq.s32.totalorder %s17, 1
      %p56 = por %p54, %p55
      %p57 = scmp.ne.s32.totalorder %s48, %s49
      %p58 = scmp.eq.s32.totalorder %s17, 0
      %p59 = por %p57, %p58
      %p60 = scmp.ne.s32.totalorder %s48, %s49
      %p61 = scmp.eq.s32.totalorder %s18, 1
      %p62 = por %p60, %p61
      %p64 = scmp.ne.s32.totalorder %s49, %s63
      %p65 = scmp.eq.s32.totalorder %s18, 0
      %p66 = por %p64, %p65
      %s68 = sadd.s32 %s67, 1
      %p71 = scmp.eq.s32.totalorder %s12, 1
      %p72 = scmp.ne.s32.totalorder %s67, %s69
      %p73 = scmp.eq.s32.totalorder %s12, 0
      %p74 = por %p72, %p73
      %p75 = scmp.ne.s32.totalorder %s67, %s69
      %p76 = scmp.eq.s32.totalorder %s17, 1
      %p77 = por %p75, %p76
      %p78 = scmp.ne.s32.totalorder %s69, %s70
      %p79 = scmp.eq.s32.totalorder %s17, 0
      %p80 = por %p78, %p79
      %p81 = scmp.ne.s32.totalorder %s69, %s70
      %p82 = scmp.eq.s32.totalorder %s18, 1
      %p83 = por %p81, %p82
      %p85 = scmp.ne.s32.totalorder %s70, %s84
      %p86 = scmp.eq.s32.totalorder %s18, 0
      %p87 = por %p85, %p86
      %s89 = sadd.s32 %s88, 1
      %p92 = scmp.eq.s32.totalorder %s12, 1
      %p93 = scmp.ne.s32.totalorder %s88, %s90
      %p94 = scmp.eq.s32.totalorder %s12, 0
      %p95 = por %p93, %p94
      %p96 = scmp.ne.s32.totalorder %s88, %s90
      %p97 = scmp.eq.s32.totalorder %s17, 1
      %p98 = por %p96, %p97
      %p99 = scmp.ne.s32.totalorder %s90, %s91
      %p100 = scmp.eq.s32.totalorder %s17, 0
      %p101 = por %p99, %p100
      %p102 = scmp.ne.s32.totalorder %s90, %s91
      %p103 = scmp.eq.s32.totalorder %s18, 1
      %p104 = por %p102, %p103
      %p106 = scmp.ne.s32.totalorder %s91, %s105
      %p107 = scmp.eq.s32.totalorder %s18, 0
      %p108 = por %p106, %p107
      %s110 = sadd.s32 %s109, 1
      %p113 = scmp.eq.s32.totalorder %s12, 1
      %p114 = scmp.ne.s32.totalorder %s109, %s111
      %p115 = scmp.eq.s32.totalorder %s12, 0
      %p116 = por %p114, %p115
      %p117 = scmp.ne.s32.totalorder %s109, %s111
      %p118 = scmp.eq.s32.totalorder %s17, 1
      %p119 = por %p117, %p118
      %p120 = scmp.ne.s32.totalorder %s111, %s112
      %p121 = scmp.eq.s32.totalorder %s17, 0
      %p122 = por %p120, %p121
      %p123 = scmp.ne.s32.totalorder %s111, %s112
      %p124 = scmp.eq.s32.totalorder %s18, 1
      %p125 = por %p123, %p124
      %p127 = scmp.ne.s32.totalorder %s112, %s126
      %p128 = scmp.eq.s32.totalorder %s18, 0
      %p129 = por %p127, %p128
      %s130 = ssub.s32 %s12, %s19
      %p131 = scmp.eq.s32.totalorder %s130, 0
      %s133 = sadd.s32 %s132, 1
      %s134 = scalar_select %p131, %s132, %s133
      %p137 = pneg %p131
      %p138 = scmp.eq.s32.totalorder %s12, 1
      %p139 = por %p137, %p138
      %p140 = scmp.ne.s32.totalorder %s132, %s135
      %p141 = scmp.eq.s32.totalorder %s12, 0
      %p142 = por %p140, %p141
      %p143 = scmp.ne.s32.totalorder %s132, %s135
      %p144 = scmp.eq.s32.totalorder %s17, 1
      %p145 = por %p143, %p144
      %p146 = scmp.ne.s32.totalorder %s135, %s136
      %p147 = scmp.eq.s32.totalorder %s17, 0
      %p148 = por %p146, %p147
      %p149 = scmp.ne.s32.totalorder %s135, %s136
      %p150 = scmp.eq.s32.totalorder %s18, 1
      %p151 = por %p149, %p150
      %p153 = scmp.ne.s32.totalorder %s136, %s152
      %p154 = scmp.eq.s32.totalorder %s18, 0
      %p155 = por %p153, %p154
      %p156 = scmp.le.s32.totalorder 1, %s12
      %p157 = scmp.lt.s32.totalorder %s12, 3
      %p158 = pnand %p156, %p157
      %p159 = pneg %p158
      // Predicated region
      $region9: #{refm_forward.1} parent=5 // pred_check
        _
      $region10: #{refm_forward.1} parent=5 // pred_check_branch
        %161 = sbr.rel (%p158) target = $region12
      $region11: #{refm_forward.1} parent=5 // pred_region
        %s162 = ssub.s32 %s12, 1
        // Predicated region
        $region13: #{refm_forward.1} parent=11 // pred_check
          %p163 = pneg %p59
        $region14: #{refm_forward.1} parent=11 // pred_check_branch
          %165 = sbr.rel (%p163) target = $region16
        $region15: #{refm_forward.1} parent=11 // pred_region
          _
        $region16: #{refm_forward.1} parent=11 // pred_fallthru
          _
        // Predicated region
        $region17: #{refm_forward.1} parent=11 // pred_check
          %p166 = pneg %p80
        $region18: #{refm_forward.1} parent=11 // pred_check_branch
          %168 = sbr.rel (%p166) target = $region20
        $region19: #{refm_forward.1} parent=11 // pred_region
          _
        $region20: #{refm_forward.1} parent=11 // pred_fallthru
          _
        // Predicated region
        $region21: #{refm_forward.1} parent=11 // pred_check
          %p169 = pneg %p101
        $region22: #{refm_forward.1} parent=11 // pred_check_branch
          %171 = sbr.rel (%p169) target = $region24
        $region23: #{refm_forward.1} parent=11 // pred_region
          _
        $region24: #{refm_forward.1} parent=11 // pred_fallthru
          _
        // Predicated region
        $region25: #{refm_forward.1} parent=11 // pred_check
          %p172 = pneg %p122
        $region26: #{refm_forward.1} parent=11 // pred_check_branch
          %174 = sbr.rel (%p172) target = $region28
        $region27: #{refm_forward.1} parent=11 // pred_region
          %s176 = ssub.s32 16, 16
          %177 = vsyncadd [#allocation4], %s176
          %s179 = sshll.u32 %s4, 4
          %s180 = int_to_ptr.vmem [resolvable:$true] %s179
          %182 = dma.vmem_to_smem %s180, 16, [#allocation3], [#allocation4]
        $region28: #{refm_forward.1} parent=11 // pred_fallthru
          _
      $region12: #{refm_forward.1} parent=5 // pred_fallthru
        _
      %p183 = scmp.lt.s32.totalorder %s12, 2
      // Predicated region
      $region29: #{refm_forward.1} parent=5 // pred_check
        %p184 = pneg %p183
      $region30: #{refm_forward.1} parent=5 // pred_check_branch
        %186 = sbr.rel (%p184) target = $region32
      $region31: #{refm_forward.1} parent=5 // pred_region
        // Predicated region
        $region33: #{refm_forward.1} parent=31 // pred_check
          %p187 = pneg %p32
        $region34: #{refm_forward.1} parent=31 // pred_check_branch
          %189 = sbr.rel (%p187) target = $region36
        $region35: #{refm_forward.1} parent=31 // pred_region
          %p190 = scmp.lt.s32.totalorder %s12, 1
          %s191 = scalar_select %p190, %s12, 1
          %s192 = smul.addr %s191, 8
          %s193 = smul.addr %s192, 8
          %s194 = scalar_lea.vmem %s0, %s193
        $region36: #{refm_forward.1} parent=31 // pred_fallthru
          _
      $region32: #{refm_forward.1} parent=5 // pred_fallthru
        _
      %p195 = scmp.le.s32.totalorder 1, %s12
      %p196 = scmp.lt.s32.totalorder %s12, 3
      %p197 = pnand %p195, %p196
      %p198 = pneg %p197
      // Predicated region
      $region37: #{refm_forward.1} parent=5 // pred_check
        _
      $region38: #{refm_forward.1} parent=5 // pred_check_branch
        %200 = sbr.rel (%p197) target = $region40
      $region39: #{refm_forward.1} parent=5 // pred_region
        %s201 = ssub.s32 %s12, 1
        // Predicated region
        $region41: #{refm_forward.1} parent=39 // pred_check
          %p202 = pneg %p122
        $region42: #{refm_forward.1} parent=39 // pred_check_branch
          %204 = sbr.rel (%p202) target = $region44
        $region43: #{refm_forward.1} parent=39 // pred_region
          %205 = dma.done [#allocation4], 16
        $region44: #{refm_forward.1} parent=39 // pred_fallthru
          _
        %206 = sfence
        %p207 = scmp.lt.s32.totalorder %s17, 1
        %s208 = scalar_select %p207, %s17, 1
        %s209 = smul.addr %s208, 8
        %s210 = smul.addr %s209, 8
        %s211 = scalar_lea.vmem %s0, %s210
        %p212 = pneg %p38
        %p213 = pneg %p35
        %p214 = pneg %p59
        %p215 = pneg %p56
        %p216 = pneg %p80
        %p217 = pneg %p77
        %p218 = pneg %p101
        %p219 = pneg %p98
        %p220 = pneg %p122
        %p221 = pneg %p119
        %p222 = pneg %p148
        %p223 = pneg %p145
        %p224 = scmp.lt.s32.totalorder %s17, 1
        %s225 = scalar_select %p224, %s17, 1
        %s226 = smul.addr %s225, 8
        %s227 = smul.addr %s226, 8
        %s228 = scalar_lea.vmem %s5, %s227
        %p229 = scmp.lt.s32.totalorder %s17, 1
        %s230 = scalar_select %p229, %s17, 1
        %s231 = smul.addr %s230, 8
        %s232 = smul.addr %s231, 8
        %s233 = scalar_lea.vmem %s0, %s232
        %p234 = scmp.lt.s32.totalorder %s17, 1
        %s235 = scalar_select %p234, %s17, 1
        %s236 = smul.addr %s235, 8
        %s237 = smul.addr %s236, 8
        %s238 = scalar_lea.vmem %s5, %s237
        %v239 = vld [vmem:[%s233] sm:$0xff]
        %v240 = vld [vmem:[%s233 + $0x8] sm:$0xff]
        %v241 = vld [vmem:[%s233 + $0x10] sm:$0xff]
        %v242 = vld [vmem:[%s233 + $0x18] sm:$0xff]
        %v243 = vld [vmem:[%s233 + $0x20] sm:$0xff]
        %v244 = vld [vmem:[%s233 + $0x28] sm:$0xff]
        %v245 = vld [vmem:[%s233 + $0x30] sm:$0xff]
        %v246 = vld [vmem:[%s233 + $0x38] sm:$0xff]
        %v247 = vadd.f32 %v239, %v240
        %248 = vadd.xlane.f32.xlu0 %v247
        %v249 = vpop.xlane.xlu0 %248
        %v250 = vadd.f32 %v241, %v242
        %251 = vadd.xlane.f32.xlu0 %v250
        %v252 = vpop.xlane.xlu0 %251
        %v253 = vadd.f32 %v243, %v244
        %254 = vadd.xlane.f32.xlu0 %v253
        %v255 = vpop.xlane.xlu0 %254
        %v256 = vadd.f32 %v245, %v246
        %257 = vadd.xlane.f32.xlu0 %v256
        %v258 = vpop.xlane.xlu0 %257
        %v259 = vrcp.pop 256.0
        %v260 = vmul.f32 %v249, %v259
        %v261 = vmul.f32 %v252, %v259
        %v262 = vmul.f32 %v255, %v259
        %v263 = vmul.f32 %v258, %v259
        %v264 = vmax.f32 %v239, %v240
        %265 = vmax.xlane.f32.xlu0 %v264
        %v266 = vpop.xlane.xlu0 %265
        %v267 = vmax.f32 %v241, %v242
        %268 = vmax.xlane.f32.xlu0 %v267
        %v269 = vpop.xlane.xlu0 %268
        %v270 = vmax.f32 %v243, %v244
        %271 = vmax.xlane.f32.xlu0 %v270
        %v272 = vpop.xlane.xlu0 %271
        %v273 = vmax.f32 %v245, %v246
        %274 = vmax.xlane.f32.xlu0 %v273
        %v275 = vpop.xlane.xlu0 %274
        %v276 = vld [vmem:[%s1] sm:$0x3]
        %v277 = vld [vmem:[%s2] sm:$0xff]
        %v278 = vld [vmem:[%s2 + $0x8] sm:$0xff]
        %v279 = vld [vmem:[%s2 + $0x10] sm:$0xff]
        %v280 = vld [vmem:[%s2 + $0x18] sm:$0xff]
        %vm281 = vcmask 261120
        %v283 = vsel %vm281, %v276, 0
        %285 = vmatprep.subr.mxu0 0.0
        %286 = vmatpush1.msra.mxu0 0.0
        %287 = vmatprep.subr.mxu0 0.0
        %288 = vmatpush1.msra.mxu0 0.0
        %289 = vmatprep.subr.mxu0 0.0
        %290 = vmatpush1.msra.mxu0 0.0
        %291 = vmatprep.subr.mxu0 0.0
        %292 = vmatpush1.msra.mxu0 0.0
        %293 = vmatprep.subr.mxu0 0.0
        %294 = vmatpush1.msra.mxu0 0.0
        %295 = vmatprep.subr.mxu0 0.0
        %296 = vmatpush1.msra.mxu0 0.0
        %297 = vmatprep.subr.mxu0 0.0
        %298 = vmatpush1.msra.mxu0 0.0
        %299 = vmatprep.subr.mxu0 0.0
        %300 = vmatpush1.msra.mxu0 0.0
        %301 = vmatprep.subr.mxu0 0.0
        %302 = vmatpush1.msra.mxu0 0.0
        %303 = vmatprep.subr.mxu0 0.0
        %304 = vmatpush1.msra.mxu0 0.0
        %305 = vmatprep.subr.mxu0 0.0
        %306 = vmatpush1.msra.mxu0 0.0
        %307 = vmatprep.subr.mxu0 0.0
        %308 = vmatpush1.msra.mxu0 0.0
        %309 = vmatprep.subr.mxu0 0.0
        %310 = vmatpush1.msra.mxu0 %v263
        %311 = vmatprep.subr.mxu0 0.0
        %312 = vmatpush1.msra.mxu0 %v262
        %313 = vmatprep.subr.mxu0 0.0
        %314 = vmatpush1.msra.mxu0 %v261
        %315 = vmatprep.subr.mxu0 0.0
        %316 = vmatpush1.msra.mxu0 %v260
        %317 = vmatprep.subr.mxu0 0.0
        %318 = vmatpush2.msra.mxu0 0.0
        %319 = vmatprep.subr.mxu0 0.0
        %320 = vmatpush2.msra.mxu0 0.0
        %321 = vmatprep.subr.mxu0 0.0
        %322 = vmatpush2.msra.mxu0 0.0
        %323 = vmatprep.subr.mxu0 0.0
        %324 = vmatpush2.msra.mxu0 0.0
        %325 = vmatprep.subr.mxu0 0.0
        %326 = vmatpush2.msra.mxu0 0.0
        %327 = vmatprep.subr.mxu0 0.0
        %328 = vmatpush2.msra.mxu0 0.0
        %329 = vmatprep.subr.mxu0 0.0
        %330 = vmatpush2.msra.mxu0 0.0
        %331 = vmatprep.subr.mxu0 0.0
        %332 = vmatpush2.msra.mxu0 0.0
        %333 = vmatprep.subr.mxu0 0.0
        %334 = vmatpush2.msra.mxu0 0.0
        %335 = vmatprep.subr.mxu0 0.0
        %336 = vmatpush2.msra.mxu0 0.0
        %337 = vmatprep.subr.mxu0 0.0
        %338 = vmatpush2.msra.mxu0 0.0
        %339 = vmatprep.subr.mxu0 0.0
        %340 = vmatpush2.msra.mxu0 0.0
        %341 = vmatprep.subr.mxu0 0.0
        %342 = vmatpush2.msra.mxu0 0.0
        %343 = vmatprep.subr.mxu0 0.0
        %344 = vmatpush2.msra.mxu0 0.0
        %345 = vmatprep.subr.mxu0 0.0
        %346 = vmatpush2.msra.mxu0 0.0
        %347 = vmatprep.subr.mxu0 0.0
        %348 = vmatpush2.msra.mxu0 0.0
        %349 = vmatprep.mubr.f32.mxu0 0.0
        %350 = vmatmul.mubr.f32.gmra.mxu0 %v283
        %v351 = vpop.f32.mrf.mxu0
        %v352 = vadd.f32 0.0, %v351
        %v353 = vpop.f32.mrf.mxu0
        %354 = vdwg.mxu0
        %v355 = vmax.f32 %v352, 0.0
        %356 = vmatprep.subr.mxu0 0.0
        %357 = vmatpush1.msra.mxu0 0.0
        %358 = vmatprep.subr.mxu0 0.0
        %359 = vmatpush1.msra.mxu0 0.0
        %360 = vmatprep.subr.mxu0 0.0
        %361 = vmatpush1.msra.mxu0 0.0
        %362 = vmatprep.subr.mxu0 0.0
        %363 = vmatpush1.msra.mxu0 0.0
        %364 = vmatprep.subr.mxu0 0.0
        %365 = vmatpush1.msra.mxu0 0.0
        %366 = vmatprep.subr.mxu0 0.0
        %367 = vmatpush1.msra.mxu0 0.0
        %368 = vmatprep.subr.mxu0 0.0
        %369 = vmatpush1.msra.mxu0 0.0
        %370 = vmatprep.subr.mxu0 0.0
        %371 = vmatpush1.msra.mxu0 0.0
        %372 = vmatprep.subr.mxu0 0.0
        %373 = vmatpush1.msra.mxu0 0.0
        %374 = vmatprep.subr.mxu0 0.0
        %375 = vmatpush1.msra.mxu0 0.0
        %376 = vmatprep.subr.mxu0 0.0
        %377 = vmatpush1.msra.mxu0 0.0
        %378 = vmatprep.subr.mxu0 0.0
        %379 = vmatpush1.msra.mxu0 0.0
        %380 = vmatprep.subr.mxu0 0.0
        %381 = vmatpush1.msra.mxu0 %v275
        %382 = vmatprep.subr.mxu0 0.0
        %383 = vmatpush1.msra.mxu0 %v272
        %384 = vmatprep.subr.mxu0 0.0
        %385 = vmatpush1.msra.mxu0 %v269
        %386 = vmatprep.subr.mxu0 0.0
        %387 = vmatpush1.msra.mxu0 %v266
        %388 = vmatprep.subr.mxu0 0.0
        %389 = vmatpush2.msra.mxu0 0.0
        %390 = vmatprep.subr.mxu0 0.0
        %391 = vmatpush2.msra.mxu0 0.0
        %392 = vmatprep.subr.mxu0 0.0
        %393 = vmatpush2.msra.mxu0 0.0
        %394 = vmatprep.subr.mxu0 0.0
        %395 = vmatpush2.msra.mxu0 0.0
        %396 = vmatprep.subr.mxu0 0.0
        %397 = vmatpush2.msra.mxu0 0.0
        %398 = vmatprep.subr.mxu0 0.0
        %399 = vmatpush2.msra.mxu0 0.0
        %400 = vmatprep.subr.mxu0 0.0
        %401 = vmatpush2.msra.mxu0 0.0
        %402 = vmatprep.subr.mxu0 0.0
        %403 = vmatpush2.msra.mxu0 0.0
        %404 = vmatprep.subr.mxu0 0.0
        %405 = vmatpush2.msra.mxu0 0.0
        %406 = vmatprep.subr.mxu0 0.0
        %407 = vmatpush2.msra.mxu0 0.0
        %408 = vmatprep.subr.mxu0 0.0
        %409 = vmatpush2.msra.mxu0 0.0
        %410 = vmatprep.subr.mxu0 0.0
        %411 = vmatpush2.msra.mxu0 0.0
        %412 = vmatprep.subr.mxu0 0.0
        %413 = vmatpush2.msra.mxu0 0.0
        %414 = vmatprep.subr.mxu0 0.0
        %415 = vmatpush2.msra.mxu0 0.0
        %416 = vmatprep.subr.mxu0 0.0
        %417 = vmatpush2.msra.mxu0 0.0
        %418 = vmatprep.subr.mxu0 0.0
        %419 = vmatpush2.msra.mxu0 0.0
        %420 = vmatprep.mubr.f32.mxu0 0.0
        %421 = vmatmul.mubr.f32.gmra.mxu0 %v283
        %v422 = vpop.f32.mrf.mxu0
        %v423 = vadd.f32 0.0, %v422
        %v424 = vpop.f32.mrf.mxu0
        %425 = vdwg.mxu0
        %v426 = vmax.f32 %v423, 0.0
        %v427 = vadd.f32 %v355, %v426
        %vm428 = vcmask 15360
        %v430 = vsel %vm428, %v277, 0
        %v433 = vsel %vm428, %v278, 0
        %v436 = vsel %vm428, %v279, 0
        %v439 = vsel %vm428, %v280, 0
        %vm441 = vcmask 1041408
        %v443 = vsel %vm441, %v427, 0
        %445 = vmatprep.subr.mxu0 0.0
        %446 = vmatpush1.msra.mxu0 0.0
        %447 = vmatprep.subr.mxu0 0.0
        %448 = vmatpush1.msra.mxu0 0.0
        %449 = vmatprep.subr.mxu0 0.0
        %450 = vmatpush1.msra.mxu0 0.0
        %451 = vmatprep.subr.mxu0 0.0
        %452 = vmatpush1.msra.mxu0 0.0
        %453 = vmatprep.subr.mxu0 0.0
        %454 = vmatpush1.msra.mxu0 0.0
        %455 = vmatprep.subr.mxu0 0.0
        %456 = vmatpush1.msra.mxu0 0.0
        %457 = vmatprep.subr.mxu0 0.0
        %458 = vmatpush1.msra.mxu0 0.0
        %459 = vmatprep.subr.mxu0 0.0
        %460 = vmatpush1.msra.mxu0 0.0
        %461 = vmatprep.subr.mxu0 0.0
        %462 = vmatpush1.msra.mxu0 0.0
        %463 = vmatprep.subr.mxu0 0.0
        %464 = vmatpush1.msra.mxu0 0.0
        %465 = vmatprep.subr.mxu0 0.0
        %466 = vmatpush1.msra.mxu0 0.0
        %467 = vmatprep.subr.mxu0 0.0
        %468 = vmatpush1.msra.mxu0 0.0
        %469 = vmatprep.subr.mxu0 0.0
        %470 = vmatpush1.msra.mxu0 0.0
        %471 = vmatprep.subr.mxu0 0.0
        %472 = vmatpush1.msra.mxu0 0.0
        %473 = vmatprep.subr.mxu0 0.0
        %474 = vmatpush1.msra.mxu0 0.0
        %475 = vmatprep.subr.mxu0 0.0
        %476 = vmatpush1.msra.mxu0 %v443
        %477 = vmatprep.subr.mxu0 0.0
        %478 = vmatpush2.msra.mxu0 0.0
        %479 = vmatprep.subr.mxu0 0.0
        %480 = vmatpush2.msra.mxu0 0.0
        %481 = vmatprep.subr.mxu0 0.0
        %482 = vmatpush2.msra.mxu0 0.0
        %483 = vmatprep.subr.mxu0 0.0
        %484 = vmatpush2.msra.mxu0 0.0
        %485 = vmatprep.subr.mxu0 0.0
        %486 = vmatpush2.msra.mxu0 0.0
        %487 = vmatprep.subr.mxu0 0.0
        %488 = vmatpush2.msra.mxu0 0.0
        %489 = vmatprep.subr.mxu0 0.0
        %490 = vmatpush2.msra.mxu0 0.0
        %491 = vmatprep.subr.mxu0 0.0
        %492 = vmatpush2.msra.mxu0 0.0
        %493 = vmatprep.subr.mxu0 0.0
        %494 = vmatpush2.msra.mxu0 0.0
        %495 = vmatprep.subr.mxu0 0.0
        %496 = vmatpush2.msra.mxu0 0.0
        %497 = vmatprep.subr.mxu0 0.0
        %498 = vmatpush2.msra.mxu0 0.0
        %499 = vmatprep.subr.mxu0 0.0
        %500 = vmatpush2.msra.mxu0 0.0
        %501 = vmatprep.subr.mxu0 0.0
        %502 = vmatpush2.msra.mxu0 0.0
        %503 = vmatprep.subr.mxu0 0.0
        %504 = vmatpush2.msra.mxu0 0.0
        %505 = vmatprep.subr.mxu0 0.0
        %506 = vmatpush2.msra.mxu0 0.0
        %507 = vmatprep.subr.mxu0 0.0
        %508 = vmatpush2.msra.mxu0 0.0
        %509 = vmatprep.mubr.f32.mxu0 0.0
        %510 = vmatmul.mubr.f32.gmra.mxu0 %v430
        %v511 = vpop.f32.mrf.mxu0
        %v512 = vadd.f32 0.0, %v511
        %v513 = vpop.f32.mrf.mxu0
        %514 = vmatprep.mubr.f32.mxu0 0.0
        %515 = vmatmul.mubr.f32.gmra.mxu0 %v433
        %v516 = vpop.f32.mrf.mxu0
        %v517 = vadd.f32 0.0, %v516
        %v518 = vpop.f32.mrf.mxu0
        %519 = vmatprep.mubr.f32.mxu0 0.0
        %520 = vmatmul.mubr.f32.gmra.mxu0 %v436
        %v521 = vpop.f32.mrf.mxu0
        %v522 = vadd.f32 0.0, %v521
        %v523 = vpop.f32.mrf.mxu0
        %524 = vmatprep.mubr.f32.mxu0 0.0
        %525 = vmatmul.mubr.f32.gmra.mxu0 %v439
        %v526 = vpop.f32.mrf.mxu0
        %v527 = vadd.f32 0.0, %v526
        %v528 = vpop.f32.mrf.mxu0
        %529 = vdwg.mxu0
        %v530 = vxor.u32 %v512, 2147483648
        %v531 = vxor.u32 %v517, 2147483648
        %v532 = vxor.u32 %v522, 2147483648
        %v533 = vxor.u32 %v527, 2147483648
        %v534 = vmul.f32 %v530, 1.442695
        %v535 = vpow.pop %v534
        %v536 = vmul.f32 %v531, 1.442695
        %v537 = vpow.pop %v536
        %v538 = vmul.f32 %v532, 1.442695
        %v539 = vpow.pop %v538
        %v540 = vmul.f32 %v533, 1.442695
        %v541 = vpow.pop %v540
        %v542 = vadd.f32 %v535, 1.0
        %v543 = vadd.f32 %v537, 1.0
        %v544 = vadd.f32 %v539, 1.0
        %v545 = vadd.f32 %v541, 1.0
        %v546 = vrcp.pop %v542
        %v547 = vmul.f32 1.0, %v546
        %v548 = vrcp.pop %v543
        %v549 = vmul.f32 1.0, %v548
        %v550 = vrcp.pop %v544
        %v551 = vmul.f32 1.0, %v550
        %v552 = vrcp.pop %v545
        %v553 = vmul.f32 1.0, %v552
        %555 = vset.pattern.permute.xlu0 0
        %556 = vperm.xlu0 %555, %v547
        %v557 = vpop.permute.xlu0 %556
        %560 = vset.pattern.permute.xlu0 0
        %561 = vperm.xlu0 %560, %v549
        %v562 = vpop.permute.xlu0 %561
        %565 = vset.pattern.permute.xlu0 0
        %566 = vperm.xlu0 %565, %v551
        %v567 = vpop.permute.xlu0 %566
        %570 = vset.pattern.permute.xlu0 0
        %571 = vperm.xlu0 %570, %v553
        %v572 = vpop.permute.xlu0 %571
        %v574 = vmul.f32 %v239, %v557
        %v575 = vmul.f32 %v240, %v557
        %v576 = vmul.f32 %v241, %v562
        %v577 = vmul.f32 %v242, %v562
        %v578 = vmul.f32 %v243, %v567
        %v579 = vmul.f32 %v244, %v567
        %v580 = vmul.f32 %v245, %v572
        %v581 = vmul.f32 %v246, %v572
        %582 = vst [vmem:[#allocation2] sm:$0x3] 0.0
        %583 = vst [vmem:[#allocation2 + $0x6] sm:$0x3] 0.0
        %v584 = vadd.f32 %v574, %v576
        %v585 = vadd.f32 %v584, %v578
        %v586 = vadd.f32 %v585, %v580
        %v587 = vrot.slane %v586, 4
        %v588 = vadd.f32 %v586, %v587
        %v589 = vrot.slane %v588, 2
        %v590 = vadd.f32 %v588, %v589
        %v591 = vrot.slane %v590, 1
        %v592 = vadd.f32 %v590, %v591
        %v593 = vadd.f32 %v575, %v577
        %v594 = vadd.f32 %v593, %v579
        %v595 = vadd.f32 %v594, %v581
        %v596 = vrot.slane %v595, 4
        %v597 = vadd.f32 %v595, %v596
        %v598 = vrot.slane %v597, 2
        %v599 = vadd.f32 %v597, %v598
        %v600 = vrot.slane %v599, 1
        %v601 = vadd.f32 %v599, %v600
        %v602 = vrcp.pop 32.0
        %v603 = vmul.f32 %v592, %v602
        %v604 = vmul.f32 %v601, %v602
        %v607 = vcombine.low %v603, %v604
        %v609 = vunpack.c.l.s4 1966171168
        %v610 = vunpack.c.0.s8 %v609
        %v611 = vlaneseq
        %v612 = vshrl.u32 %v611, 7
        %v613 = vsub.s32 %v610, %v612
        %v614 = vrot.slane %v607, %v613
        %v616 = vunpack.c.l.s4 1966171168
        %v617 = vunpack.c.0.s8 %v616
        %v618 = vlaneseq
        %v619 = vshrl.u32 %v618, 7
        %v620 = vsub.s32 %v617, %v619
        %v621 = vrot.slane %v614, %v620
        %v623 = vlaneseq
        %vm624 = vcmp.ge.s32.totalorder %v623, 0
        %vm625 = vcmp.lt.s32.totalorder %v623, 256
        %vm626 = vmand %vm624, %vm625
        %s627 = scalar_lea.vmem [#allocation2], 2
        %628 = vst.msk [vmem:[%s627] ss:$2 sm:$0x3] %vm626, %v621
        %v629 = vmax.f32 %v574, %v578
        %v630 = vmax.f32 %v576, %v580
        %v631 = vmax.f32 %v629, %v630
        %v632 = vrot.slane %v631, 4
        %v633 = vmax.f32 %v631, %v632
        %v634 = vrot.slane %v633, 2
        %v635 = vmax.f32 %v633, %v634
        %v636 = vrot.slane %v635, 1
        %v637 = vmax.f32 %v635, %v636
        %v638 = vmax.f32 %v575, %v579
        %v639 = vmax.f32 %v577, %v581
        %v640 = vmax.f32 %v638, %v639
        %v641 = vrot.slane %v640, 4
        %v642 = vmax.f32 %v640, %v641
        %v643 = vrot.slane %v642, 2
        %v644 = vmax.f32 %v642, %v643
        %v645 = vrot.slane %v644, 1
        %v646 = vmax.f32 %v644, %v645
        %v649 = vcombine.low %v637, %v646
        %v651 = vunpack.c.l.s4 1966171168
        %v652 = vunpack.c.0.s8 %v651
        %v653 = vlaneseq
        %v654 = vshrl.u32 %v653, 7
        %v655 = vsub.s32 %v652, %v654
        %v656 = vrot.slane %v649, %v655
        %v658 = vunpack.c.l.s4 1966171168
        %v659 = vunpack.c.0.s8 %v658
        %v660 = vlaneseq
        %v661 = vshrl.u32 %v660, 7
        %v662 = vsub.s32 %v659, %v661
        %v663 = vrot.slane %v656, %v662
        %s665 = scalar_lea.vmem [#allocation2], 3
        %666 = vst.msk [vmem:[%s665] ss:$2 sm:$0x3] %vm626, %v663
        %v667 = vld [vmem:[#allocation2] ss:$2 sm:$0x7]
        %s668 = scalar_lea.vmem [#allocation2], 1
        %v669 = vld [vmem:[%s668] ss:$2 sm:$0x7]
        %s670 = sld [smem:[#allocation3]]
        %v671 = vstv %s670
        %v672 = vmul.f32 %v671, %v667
        %s673 = sld [smem:[#allocation3 + $0x31]]
        %v674 = vstv %s673
        %v675 = vmul.f32 %v674, %v669
        %v676 = vadd.f32 %v672, %v675
        %s677 = sld [smem:[#allocation3 + $0x7]]
        %v678 = vstv %s677
        %v679 = vmul.f32 %v678, %v667
        %s680 = sld [smem:[#allocation3 + $0x38]]
        %v681 = vstv %s680
        %v682 = vmul.f32 %v681, %v669
        %v683 = vadd.f32 %v679, %v682
        %685 = vrot.lane.b32.xlu0 %v683, 112
        %v686 = vpop.permute.xlu0 %685
        %v687 = vrot.slane %v686, 1
        %vm688 = vcmask 916480
        %v689 = vsel %vm688, %v686, %v687
        %v691 = vadd.f32 %v676, %v689
        %s692 = sld [smem:[#allocation3 + $0xe]]
        %v693 = vstv %s692
        %v694 = vmul.f32 %v693, %v667
        %s695 = sld [smem:[#allocation3 + $0x3f]]
        %v696 = vstv %s695
        %v697 = vmul.f32 %v696, %v669
        %v698 = vadd.f32 %v694, %v697
        %700 = vrot.lane.b32.xlu0 %v698, 96
        %v701 = vpop.permute.xlu0 %700
        %v702 = vrot.slane %v701, 1
        %vm703 = vcmask 785408
        %v704 = vsel %vm703, %v701, %v702
        %v706 = vadd.f32 %v691, %v704
        %s707 = sld [smem:[#allocation3 + $0x15]]
        %v708 = vstv %s707
        %v709 = vmul.f32 %v708, %v667
        %s710 = sld [smem:[#allocation3 + $0x46]]
        %v711 = vstv %s710
        %v712 = vmul.f32 %v711, %v669
        %v713 = vadd.f32 %v709, %v712
        %715 = vrot.lane.b32.xlu0 %v713, 80
        %v716 = vpop.permute.xlu0 %715
        %v717 = vrot.slane %v716, 1
        %vm718 = vcmask 654336
        %v719 = vsel %vm718, %v716, %v717
        %v721 = vadd.f32 %v706, %v719
        %s722 = scalar_lea.vmem [#allocation2], 2
        %v723 = vld [vmem:[%s722] ss:$2 sm:$0x7]
        %s724 = scalar_lea.vmem [#allocation2], 3
        %v725 = vld [vmem:[%s724] ss:$2 sm:$0x7]
        %s726 = sld [smem:[#allocation3 + $0x1c]]
        %v727 = vstv %s726
        %v728 = vmul.f32 %v727, %v723
        %s729 = sld [smem:[#allocation3 + $0x4d]]
        %v730 = vstv %s729
        %v731 = vmul.f32 %v730, %v725
        %v732 = vadd.f32 %v728, %v731
        %734 = vrot.lane.b32.xlu0 %v732, 64
        %v735 = vpop.permute.xlu0 %734
        %v736 = vrot.slane %v735, 7
        %vm737 = vcmask 523264
        %v738 = vsel %vm737, %v736, %v735
        %v740 = vadd.f32 %v721, %v738
        %s741 = sld [smem:[#allocation3 + $0x23]]
        %v742 = vstv %s741
        %v743 = vmul.f32 %v742, %v723
        %s744 = sld [smem:[#allocation3 + $0x54]]
        %v745 = vstv %s744
        %v746 = vmul.f32 %v745, %v725
        %v747 = vadd.f32 %v743, %v746
        %749 = vrot.lane.b32.xlu0 %v747, 48
        %v750 = vpop.permute.xlu0 %749
        %v751 = vrot.slane %v750, 7
        %vm752 = vcmask 392192
        %v753 = vsel %vm752, %v751, %v750
        %v755 = vadd.f32 %v740, %v753
        %s756 = sld [smem:[#allocation3 + $0x2a]]
        %v757 = vstv %s756
        %v758 = vmul.f32 %v757, %v723
        %s759 = sld [smem:[#allocation3 + $0x5b]]
        %v760 = vstv %s759
        %v761 = vmul.f32 %v760, %v725
        %v762 = vadd.f32 %v758, %v761
        %764 = vrot.lane.b32.xlu0 %v762, 32
        %v765 = vpop.permute.xlu0 %764
        %v766 = vrot.slane %v765, 7
        %v767 = vsel %vm281, %v766, %v765
        %v769 = vadd.f32 %v755, %v767
        %v770 = vld [vmem:[%s3] ss:$8 sm:$0x3]
        %772 = vrot.lane.b32.xlu0 %v769, 51
        %v773 = vpop.permute.xlu0 %772
        %v774 = vrot.slane %v773, 1
        %vm775 = vcmask 416768
        %v776 = vsel %vm775, %v773, %v774
        %v778 = vmul.f32 %v770, %v776
        %v779 = vadd.f32 %v778, 0.0
        %s780 = sld [smem:[#allocation3 + $0x1]]
        %v781 = vstv %s780
        %v782 = vmul.f32 %v781, %v667
        %s783 = sld [smem:[#allocation3 + $0x32]]
        %v784 = vstv %s783
        %v785 = vmul.f32 %v784, %v669
        %v786 = vadd.f32 %v782, %v785
        %s787 = sld [smem:[#allocation3 + $0x8]]
        %v788 = vstv %s787
        %v789 = vmul.f32 %v788, %v667
        %s790 = sld [smem:[#allocation3 + $0x39]]
        %v791 = vstv %s790
        %v792 = vmul.f32 %v791, %v669
        %v793 = vadd.f32 %v789, %v792
        %795 = vrot.lane.b32.xlu0 %v793, 112
        %v796 = vpop.permute.xlu0 %795
        %v797 = vrot.slane %v796, 1
        %v798 = vsel %vm688, %v796, %v797
        %v800 = vadd.f32 %v786, %v798
        %s801 = sld [smem:[#allocation3 + $0xf]]
        %v802 = vstv %s801
        %v803 = vmul.f32 %v802, %v667
        %s804 = sld [smem:[#allocation3 + $0x40]]
        %v805 = vstv %s804
        %v806 = vmul.f32 %v805, %v669
        %v807 = vadd.f32 %v803, %v806
        %809 = vrot.lane.b32.xlu0 %v807, 96
        %v810 = vpop.permute.xlu0 %809
        %v811 = vrot.slane %v810, 1
        %v812 = vsel %vm703, %v810, %v811
        %v814 = vadd.f32 %v800, %v812
        %s815 = sld [smem:[#allocation3 + $0x16]]
        %v816 = vstv %s815
        %v817 = vmul.f32 %v816, %v667
        %s818 = sld [smem:[#allocation3 + $0x47]]
        %v819 = vstv %s818
        %v820 = vmul.f32 %v819, %v669
        %v821 = vadd.f32 %v817, %v820
        %823 = vrot.lane.b32.xlu0 %v821, 80
        %v824 = vpop.permute.xlu0 %823
        %v825 = vrot.slane %v824, 1
        %v826 = vsel %vm718, %v824, %v825
        %v828 = vadd.f32 %v814, %v826
        %s829 = sld [smem:[#allocation3 + $0x1d]]
        %v830 = vstv %s829
        %v831 = vmul.f32 %v830, %v723
        %s832 = sld [smem:[#allocation3 + $0x4e]]
        %v833 = vstv %s832
        %v834 = vmul.f32 %v833, %v725
        %v835 = vadd.f32 %v831, %v834
        %837 = vrot.lane.b32.xlu0 %v835, 64
        %v838 = vpop.permute.xlu0 %837
        %v839 = vrot.slane %v838, 7
        %v840 = vsel %vm737, %v839, %v838
        %v842 = vadd.f32 %v828, %v840
        %s843 = sld [smem:[#allocation3 + $0x24]]
        %v844 = vstv %s843
        %v845 = vmul.f32 %v844, %v723
        %s846 = sld [smem:[#allocation3 + $0x55]]
        %v847 = vstv %s846
        %v848 = vmul.f32 %v847, %v725
        %v849 = vadd.f32 %v845, %v848
        %851 = vrot.lane.b32.xlu0 %v849, 48
        %v852 = vpop.permute.xlu0 %851
        %v853 = vrot.slane %v852, 7
        %v854 = vsel %vm752, %v853, %v852
        %v856 = vadd.f32 %v842, %v854
        %s857 = sld [smem:[#allocation3 + $0x2b]]
        %v858 = vstv %s857
        %v859 = vmul.f32 %v858, %v723
        %s860 = sld [smem:[#allocation3 + $0x5c]]
        %v861 = vstv %s860
        %v862 = vmul.f32 %v861, %v725
        %v863 = vadd.f32 %v859, %v862
        %865 = vrot.lane.b32.xlu0 %v863, 32
        %v866 = vpop.permute.xlu0 %865
        %v867 = vrot.slane %v866, 7
        %v868 = vsel %vm281, %v867, %v866
        %v870 = vadd.f32 %v856, %v868
        %s871 = scalar_lea.vmem %s3, 1
        %v872 = vld [vmem:[%s871] ss:$8 sm:$0x3]
        %874 = vrot.lane.b32.xlu0 %v870, 50
        %v875 = vpop.permute.xlu0 %874
        %v876 = vrot.slane %v875, 1
        %vm877 = vcmask 408576
        %v878 = vsel %vm877, %v875, %v876
        %v880 = vmul.f32 %v872, %v878
        %v881 = vadd.f32 %v779, %v880
        %s882 = sld [smem:[#allocation3 + $0x2]]
        %v883 = vstv %s882
        %v884 = vmul.f32 %v883, %v667
        %s885 = sld [smem:[#allocation3 + $0x33]]
        %v886 = vstv %s885
        %v887 = vmul.f32 %v886, %v669
        %v888 = vadd.f32 %v884, %v887
        %s889 = sld [smem:[#allocation3 + $0x9]]
        %v890 = vstv %s889
        %v891 = vmul.f32 %v890, %v667
        %s892 = sld [smem:[#allocation3 + $0x3a]]
        %v893 = vstv %s892
        %v894 = vmul.f32 %v893, %v669
        %v895 = vadd.f32 %v891, %v894
        %897 = vrot.lane.b32.xlu0 %v895, 112
        %v898 = vpop.permute.xlu0 %897
        %v899 = vrot.slane %v898, 1
        %v900 = vsel %vm688, %v898, %v899
        %v902 = vadd.f32 %v888, %v900
        %s903 = sld [smem:[#allocation3 + $0x10]]
        %v904 = vstv %s903
        %v905 = vmul.f32 %v904, %v667
        %s906 = sld [smem:[#allocation3 + $0x41]]
        %v907 = vstv %s906
        %v908 = vmul.f32 %v907, %v669
        %v909 = vadd.f32 %v905, %v908
        %911 = vrot.lane.b32.xlu0 %v909, 96
        %v912 = vpop.permute.xlu0 %911
        %v913 = vrot.slane %v912, 1
        %v914 = vsel %vm703, %v912, %v913
        %v916 = vadd.f32 %v902, %v914
        %s917 = sld [smem:[#allocation3 + $0x17]]
        %v918 = vstv %s917
        %v919 = vmul.f32 %v918, %v667
        %s920 = sld [smem:[#allocation3 + $0x48]]
        %v921 = vstv %s920
        %v922 = vmul.f32 %v921, %v669
        %v923 = vadd.f32 %v919, %v922
        %925 = vrot.lane.b32.xlu0 %v923, 80
        %v926 = vpop.permute.xlu0 %925
        %v927 = vrot.slane %v926, 1
        %v928 = vsel %vm718, %v926, %v927
        %v930 = vadd.f32 %v916, %v928
        %s931 = sld [smem:[#allocation3 + $0x1e]]
        %v932 = vstv %s931
        %v933 = vmul.f32 %v932, %v723
        %s934 = sld [smem:[#allocation3 + $0x4f]]
        %v935 = vstv %s934
        %v936 = vmul.f32 %v935, %v725
        %v937 = vadd.f32 %v933, %v936
        %939 = vrot.lane.b32.xlu0 %v937, 64
        %v940 = vpop.permute.xlu0 %939
        %v941 = vrot.slane %v940, 7
        %v942 = vsel %vm737, %v941, %v940
        %v944 = vadd.f32 %v930, %v942
        %s945 = sld [smem:[#allocation3 + $0x25]]
        %v946 = vstv %s945
        %v947 = vmul.f32 %v946, %v723
        %s948 = sld [smem:[#allocation3 + $0x56]]
        %v949 = vstv %s948
        %v950 = vmul.f32 %v949, %v725
        %v951 = vadd.f32 %v947, %v950
        %953 = vrot.lane.b32.xlu0 %v951, 48
        %v954 = vpop.permute.xlu0 %953
        %v955 = vrot.slane %v954, 7
        %v956 = vsel %vm752, %v955, %v954
        %v958 = vadd.f32 %v944, %v956
        %s959 = sld [smem:[#allocation3 + $0x2c]]
        %v960 = vstv %s959
        %v961 = vmul.f32 %v960, %v723
        %s962 = sld [smem:[#allocation3 + $0x5d]]
        %v963 = vstv %s962
        %v964 = vmul.f32 %v963, %v725
        %v965 = vadd.f32 %v961, %v964
        %967 = vrot.lane.b32.xlu0 %v965, 32
        %v968 = vpop.permute.xlu0 %967
        %v969 = vrot.slane %v968, 7
        %v970 = vsel %vm281, %v969, %v968
        %v972 = vadd.f32 %v958, %v970
        %s973 = scalar_lea.vmem %s3, 2
        %v974 = vld [vmem:[%s973] ss:$8 sm:$0x3]
        %976 = vrot.lane.b32.xlu0 %v972, 49
        %v977 = vpop.permute.xlu0 %976
        %v978 = vrot.slane %v977, 1
        %vm979 = vcmask 400384
        %v980 = vsel %vm979, %v977, %v978
        %v982 = vmul.f32 %v974, %v980
        %v983 = vadd.f32 %v881, %v982
        %s984 = sld [smem:[#allocation3 + $0x3]]
        %v985 = vstv %s984
        %v986 = vmul.f32 %v985, %v667
        %s987 = sld [smem:[#allocation3 + $0x34]]
        %v988 = vstv %s987
        %v989 = vmul.f32 %v988, %v669
        %v990 = vadd.f32 %v986, %v989
        %s991 = sld [smem:[#allocation3 + $0xa]]
        %v992 = vstv %s991
        %v993 = vmul.f32 %v992, %v667
        %s994 = sld [smem:[#allocation3 + $0x3b]]
        %v995 = vstv %s994
        %v996 = vmul.f32 %v995, %v669
        %v997 = vadd.f32 %v993, %v996
        %999 = vrot.lane.b32.xlu0 %v997, 112
        %v1000 = vpop.permute.xlu0 %999
        %v1001 = vrot.slane %v1000, 1
        %v1002 = vsel %vm688, %v1000, %v1001
        %v1004 = vadd.f32 %v990, %v1002
        %s1005 = sld [smem:[#allocation3 + $0x11]]
        %v1006 = vstv %s1005
        %v1007 = vmul.f32 %v1006, %v667
        %s1008 = sld [smem:[#allocation3 + $0x42]]
        %v1009 = vstv %s1008
        %v1010 = vmul.f32 %v1009, %v669
        %v1011 = vadd.f32 %v1007, %v1010
        %1013 = vrot.lane.b32.xlu0 %v1011, 96
        %v1014 = vpop.permute.xlu0 %1013
        %v1015 = vrot.slane %v1014, 1
        %v1016 = vsel %vm703, %v1014, %v1015
        %v1018 = vadd.f32 %v1004, %v1016
        %v1019 = vld [vmem:[%s627] ss:$2 sm:$0x3]
        %v1020 = vld [vmem:[%s665] ss:$2 sm:$0x3]
        %s1021 = sld [smem:[#allocation3 + $0x18]]
        %v1022 = vstv %s1021
        %v1023 = vmul.f32 %v1022, %v1019
        %s1024 = sld [smem:[#allocation3 + $0x49]]
        %v1025 = vstv %s1024
        %v1026 = vmul.f32 %v1025, %v1020
        %v1027 = vadd.f32 %v1023, %v1026
        %1029 = vrot.lane.b32.xlu0 %v1027, 80
        %v1030 = vpop.permute.xlu0 %1029
        %v1031 = vrot.slane %v1030, 7
        %v1032 = vsel %vm718, %v1031, %v1030
        %v1034 = vadd.f32 %v1018, %v1032
        %s1035 = sld [smem:[#allocation3 + $0x1f]]
        %v1036 = vstv %s1035
        %v1037 = vmul.f32 %v1036, %v723
        %s1038 = sld [smem:[#allocation3 + $0x50]]
        %v1039 = vstv %s1038
        %v1040 = vmul.f32 %v1039, %v725
        %v1041 = vadd.f32 %v1037, %v1040
        %1043 = vrot.lane.b32.xlu0 %v1041, 64
        %v1044 = vpop.permute.xlu0 %1043
        %v1045 = vrot.slane %v1044, 7
        %v1046 = vsel %vm737, %v1045, %v1044
        %v1048 = vadd.f32 %v1034, %v1046
        %s1049 = sld [smem:[#allocation3 + $0x26]]
        %v1050 = vstv %s1049
        %v1051 = vmul.f32 %v1050, %v723
        %s1052 = sld [smem:[#allocation3 + $0x57]]
        %v1053 = vstv %s1052
        %v1054 = vmul.f32 %v1053, %v725
        %v1055 = vadd.f32 %v1051, %v1054
        %1057 = vrot.lane.b32.xlu0 %v1055, 48
        %v1058 = vpop.permute.xlu0 %1057
        %v1059 = vrot.slane %v1058, 7
        %v1060 = vsel %vm752, %v1059, %v1058
        %v1062 = vadd.f32 %v1048, %v1060
        %s1063 = sld [smem:[#allocation3 + $0x2d]]
        %v1064 = vstv %s1063
        %v1065 = vmul.f32 %v1064, %v723
        %s1066 = sld [smem:[#allocation3 + $0x5e]]
        %v1067 = vstv %s1066
        %v1068 = vmul.f32 %v1067, %v725
        %v1069 = vadd.f32 %v1065, %v1068
        %1071 = vrot.lane.b32.xlu0 %v1069, 32
        %v1072 = vpop.permute.xlu0 %1071
        %v1073 = vrot.slane %v1072, 7
        %v1074 = vsel %vm281, %v1073, %v1072
        %v1076 = vadd.f32 %v1062, %v1074
        %s1077 = scalar_lea.vmem %s3, 3
        %v1078 = vld [vmem:[%s1077] ss:$8 sm:$0x3]
        %1080 = vrot.lane.b32.xlu0 %v1076, 48
        %v1081 = vpop.permute.xlu0 %1080
        %v1082 = vrot.slane %v1081, 1
        %v1083 = vsel %vm752, %v1081, %v1082
        %v1085 = vmul.f32 %v1078, %v1083
        %v1086 = vadd.f32 %v983, %v1085
        %s1087 = sld [smem:[#allocation3 + $0x4]]
        %v1088 = vstv %s1087
        %v1089 = vmul.f32 %v1088, %v667
        %s1090 = sld [smem:[#allocation3 + $0x35]]
        %v1091 = vstv %s1090
        %v1092 = vmul.f32 %v1091, %v669
        %v1093 = vadd.f32 %v1089, %v1092
        %s1094 = sld [smem:[#allocation3 + $0xb]]
        %v1095 = vstv %s1094
        %v1096 = vmul.f32 %v1095, %v667
        %s1097 = sld [smem:[#allocation3 + $0x3c]]
        %v1098 = vstv %s1097
        %v1099 = vmul.f32 %v1098, %v669
        %v1100 = vadd.f32 %v1096, %v1099
        %1102 = vrot.lane.b32.xlu0 %v1100, 112
        %v1103 = vpop.permute.xlu0 %1102
        %v1104 = vrot.slane %v1103, 1
        %v1105 = vsel %vm688, %v1103, %v1104
        %v1107 = vadd.f32 %v1093, %v1105
        %s1108 = sld [smem:[#allocation3 + $0x12]]
        %v1109 = vstv %s1108
        %v1110 = vmul.f32 %v1109, %v667
        %s1111 = sld [smem:[#allocation3 + $0x43]]
        %v1112 = vstv %s1111
        %v1113 = vmul.f32 %v1112, %v669
        %v1114 = vadd.f32 %v1110, %v1113
        %1116 = vrot.lane.b32.xlu0 %v1114, 96
        %v1117 = vpop.permute.xlu0 %1116
        %v1118 = vrot.slane %v1117, 1
        %v1119 = vsel %vm703, %v1117, %v1118
        %v1121 = vadd.f32 %v1107, %v1119
        %s1122 = sld [smem:[#allocation3 + $0x19]]
        %v1123 = vstv %s1122
        %v1124 = vmul.f32 %v1123, %v723
        %s1125 = sld [smem:[#allocation3 + $0x4a]]
        %v1126 = vstv %s1125
        %v1127 = vmul.f32 %v1126, %v725
        %v1128 = vadd.f32 %v1124, %v1127
        %1130 = vrot.lane.b32.xlu0 %v1128, 80
        %v1131 = vpop.permute.xlu0 %1130
        %v1132 = vrot.slane %v1131, 7
        %v1133 = vsel %vm718, %v1132, %v1131
        %v1135 = vadd.f32 %v1121, %v1133
        %s1136 = sld [smem:[#allocation3 + $0x20]]
        %v1137 = vstv %s1136
        %v1138 = vmul.f32 %v1137, %v723
        %s1139 = sld [smem:[#allocation3 + $0x51]]
        %v1140 = vstv %s1139
        %v1141 = vmul.f32 %v1140, %v725
        %v1142 = vadd.f32 %v1138, %v1141
        %1144 = vrot.lane.b32.xlu0 %v1142, 64
        %v1145 = vpop.permute.xlu0 %1144
        %v1146 = vrot.slane %v1145, 7
        %v1147 = vsel %vm737, %v1146, %v1145
        %v1149 = vadd.f32 %v1135, %v1147
        %s1150 = sld [smem:[#allocation3 + $0x27]]
        %v1151 = vstv %s1150
        %v1152 = vmul.f32 %v1151, %v723
        %s1153 = sld [smem:[#allocation3 + $0x58]]
        %v1154 = vstv %s1153
        %v1155 = vmul.f32 %v1154, %v725
        %v1156 = vadd.f32 %v1152, %v1155
        %1158 = vrot.lane.b32.xlu0 %v1156, 48
        %v1159 = vpop.permute.xlu0 %1158
        %v1160 = vrot.slane %v1159, 7
        %v1161 = vsel %vm752, %v1160, %v1159
        %v1163 = vadd.f32 %v1149, %v1161
        %s1164 = sld [smem:[#allocation3 + $0x2e]]
        %v1165 = vstv %s1164
        %v1166 = vmul.f32 %v1165, %v723
        %s1167 = sld [smem:[#allocation3 + $0x5f]]
        %v1168 = vstv %s1167
        %v1169 = vmul.f32 %v1168, %v725
        %v1170 = vadd.f32 %v1166, %v1169
        %1172 = vrot.lane.b32.xlu0 %v1170, 32
        %v1173 = vpop.permute.xlu0 %1172
        %v1174 = vrot.slane %v1173, 7
        %v1175 = vsel %vm281, %v1174, %v1173
        %v1177 = vadd.f32 %v1163, %v1175
        %s1178 = scalar_lea.vmem %s3, 4
        %v1179 = vld [vmem:[%s1178] ss:$8 sm:$0x3]
        %1181 = vrot.lane.b32.xlu0 %v1177, 47
        %v1182 = vpop.permute.xlu0 %1181
        %v1183 = vrot.slane %v1182, 1
        %vm1184 = vcmask 384000
        %v1185 = vsel %vm1184, %v1182, %v1183
        %v1187 = vmul.f32 %v1179, %v1185
        %v1188 = vadd.f32 %v1086, %v1187
        %s1189 = sld [smem:[#allocation3 + $0x5]]
        %v1190 = vstv %s1189
        %v1191 = vmul.f32 %v1190, %v667
        %s1192 = sld [smem:[#allocation3 + $0x36]]
        %v1193 = vstv %s1192
        %v1194 = vmul.f32 %v1193, %v669
        %v1195 = vadd.f32 %v1191, %v1194
        %s1196 = sld [smem:[#allocation3 + $0xc]]
        %v1197 = vstv %s1196
        %v1198 = vmul.f32 %v1197, %v667
        %s1199 = sld [smem:[#allocation3 + $0x3d]]
        %v1200 = vstv %s1199
        %v1201 = vmul.f32 %v1200, %v669
        %v1202 = vadd.f32 %v1198, %v1201
        %1204 = vrot.lane.b32.xlu0 %v1202, 112
        %v1205 = vpop.permute.xlu0 %1204
        %v1206 = vrot.slane %v1205, 1
        %v1207 = vsel %vm688, %v1205, %v1206
        %v1209 = vadd.f32 %v1195, %v1207
        %s1210 = sld [smem:[#allocation3 + $0x13]]
        %v1211 = vstv %s1210
        %v1212 = vmul.f32 %v1211, %v667
        %s1213 = sld [smem:[#allocation3 + $0x44]]
        %v1214 = vstv %s1213
        %v1215 = vmul.f32 %v1214, %v669
        %v1216 = vadd.f32 %v1212, %v1215
        %1218 = vrot.lane.b32.xlu0 %v1216, 96
        %v1219 = vpop.permute.xlu0 %1218
        %v1220 = vrot.slane %v1219, 1
        %v1221 = vsel %vm703, %v1219, %v1220
        %v1223 = vadd.f32 %v1209, %v1221
        %s1224 = sld [smem:[#allocation3 + $0x1a]]
        %v1225 = vstv %s1224
        %v1226 = vmul.f32 %v1225, %v723
        %s1227 = sld [smem:[#allocation3 + $0x4b]]
        %v1228 = vstv %s1227
        %v1229 = vmul.f32 %v1228, %v725
        %v1230 = vadd.f32 %v1226, %v1229
        %1232 = vrot.lane.b32.xlu0 %v1230, 80
        %v1233 = vpop.permute.xlu0 %1232
        %v1234 = vrot.slane %v1233, 7
        %v1235 = vsel %vm718, %v1234, %v1233
        %v1237 = vadd.f32 %v1223, %v1235
        %s1238 = sld [smem:[#allocation3 + $0x21]]
        %v1239 = vstv %s1238
        %v1240 = vmul.f32 %v1239, %v723
        %s1241 = sld [smem:[#allocation3 + $0x52]]
        %v1242 = vstv %s1241
        %v1243 = vmul.f32 %v1242, %v725
        %v1244 = vadd.f32 %v1240, %v1243
        %1246 = vrot.lane.b32.xlu0 %v1244, 64
        %v1247 = vpop.permute.xlu0 %1246
        %v1248 = vrot.slane %v1247, 7
        %v1249 = vsel %vm737, %v1248, %v1247
        %v1251 = vadd.f32 %v1237, %v1249
        %s1252 = sld [smem:[#allocation3 + $0x28]]
        %v1253 = vstv %s1252
        %v1254 = vmul.f32 %v1253, %v723
        %s1255 = sld [smem:[#allocation3 + $0x59]]
        %v1256 = vstv %s1255
        %v1257 = vmul.f32 %v1256, %v725
        %v1258 = vadd.f32 %v1254, %v1257
        %1260 = vrot.lane.b32.xlu0 %v1258, 48
        %v1261 = vpop.permute.xlu0 %1260
        %v1262 = vrot.slane %v1261, 7
        %v1263 = vsel %vm752, %v1262, %v1261
        %v1265 = vadd.f32 %v1251, %v1263
        %s1266 = sld [smem:[#allocation3 + $0x2f]]
        %v1267 = vstv %s1266
        %v1268 = vmul.f32 %v1267, %v723
        %s1269 = sld [smem:[#allocation3 + $0x60]]
        %v1270 = vstv %s1269
        %v1271 = vmul.f32 %v1270, %v725
        %v1272 = vadd.f32 %v1268, %v1271
        %1274 = vrot.lane.b32.xlu0 %v1272, 32
        %v1275 = vpop.permute.xlu0 %1274
        %v1276 = vrot.slane %v1275, 7
        %v1277 = vsel %vm281, %v1276, %v1275
        %v1279 = vadd.f32 %v1265, %v1277
        %s1280 = scalar_lea.vmem %s3, 5
        %v1281 = vld [vmem:[%s1280] ss:$8 sm:$0x3]
        %1283 = vrot.lane.b32.xlu0 %v1279, 46
        %v1284 = vpop.permute.xlu0 %1283
        %v1285 = vrot.slane %v1284, 1
        %vm1286 = vcmask 375808
        %v1287 = vsel %vm1286, %v1284, %v1285
        %v1289 = vmul.f32 %v1281, %v1287
        %v1290 = vadd.f32 %v1188, %v1289
        %s1291 = sld [smem:[#allocation3 + $0x6]]
        %v1292 = vstv %s1291
        %v1293 = vmul.f32 %v1292, %v667
        %s1294 = sld [smem:[#allocation3 + $0x37]]
        %v1295 = vstv %s1294
        %v1296 = vmul.f32 %v1295, %v669
        %v1297 = vadd.f32 %v1293, %v1296
        %s1298 = sld [smem:[#allocation3 + $0xd]]
        %v1299 = vstv %s1298
        %v1300 = vmul.f32 %v1299, %v667
        %s1301 = sld [smem:[#allocation3 + $0x3e]]
        %v1302 = vstv %s1301
        %v1303 = vmul.f32 %v1302, %v669
        %v1304 = vadd.f32 %v1300, %v1303
        %1306 = vrot.lane.b32.xlu0 %v1304, 112
        %v1307 = vpop.permute.xlu0 %1306
        %v1308 = vrot.slane %v1307, 1
        %v1309 = vsel %vm688, %v1307, %v1308
        %v1311 = vadd.f32 %v1297, %v1309
        %s1312 = sld [smem:[#allocation3 + $0x14]]
        %v1313 = vstv %s1312
        %v1314 = vmul.f32 %v1313, %v667
        %s1315 = sld [smem:[#allocation3 + $0x45]]
        %v1316 = vstv %s1315
        %v1317 = vmul.f32 %v1316, %v669
        %v1318 = vadd.f32 %v1314, %v1317
        %1320 = vrot.lane.b32.xlu0 %v1318, 96
        %v1321 = vpop.permute.xlu0 %1320
        %v1322 = vrot.slane %v1321, 1
        %v1323 = vsel %vm703, %v1321, %v1322
        %v1325 = vadd.f32 %v1311, %v1323
        %s1326 = sld [smem:[#allocation3 + $0x1b]]
        %v1327 = vstv %s1326
        %v1328 = vmul.f32 %v1327, %v723
        %s1329 = sld [smem:[#allocation3 + $0x4c]]
        %v1330 = vstv %s1329
        %v1331 = vmul.f32 %v1330, %v725
        %v1332 = vadd.f32 %v1328, %v1331
        %1334 = vrot.lane.b32.xlu0 %v1332, 80
        %v1335 = vpop.permute.xlu0 %1334
        %v1336 = vrot.slane %v1335, 7
        %v1337 = vsel %vm718, %v1336, %v1335
        %v1339 = vadd.f32 %v1325, %v1337
        %s1340 = sld [smem:[#allocation3 + $0x22]]
        %v1341 = vstv %s1340
        %v1342 = vmul.f32 %v1341, %v723
        %s1343 = sld [smem:[#allocation3 + $0x53]]
        %v1344 = vstv %s1343
        %v1345 = vmul.f32 %v1344, %v725
        %v1346 = vadd.f32 %v1342, %v1345
        %1348 = vrot.lane.b32.xlu0 %v1346, 64
        %v1349 = vpop.permute.xlu0 %1348
        %v1350 = vrot.slane %v1349, 7
        %v1351 = vsel %vm737, %v1350, %v1349
        %v1353 = vadd.f32 %v1339, %v1351
        %s1354 = sld [smem:[#allocation3 + $0x29]]
        %v1355 = vstv %s1354
        %v1356 = vmul.f32 %v1355, %v723
        %s1357 = sld [smem:[#allocation3 + $0x5a]]
        %v1358 = vstv %s1357
        %v1359 = vmul.f32 %v1358, %v725
        %v1360 = vadd.f32 %v1356, %v1359
        %1362 = vrot.lane.b32.xlu0 %v1360, 48
        %v1363 = vpop.permute.xlu0 %1362
        %v1364 = vrot.slane %v1363, 7
        %v1365 = vsel %vm752, %v1364, %v1363
        %v1367 = vadd.f32 %v1353, %v1365
        %s1368 = sld [smem:[#allocation3 + $0x30]]
        %v1369 = vstv %s1368
        %v1370 = vmul.f32 %v1369, %v723
        %s1371 = sld [smem:[#allocation3 + $0x61]]
        %v1372 = vstv %s1371
        %v1373 = vmul.f32 %v1372, %v725
        %v1374 = vadd.f32 %v1370, %v1373
        %1376 = vrot.lane.b32.xlu0 %v1374, 32
        %v1377 = vpop.permute.xlu0 %1376
        %v1378 = vrot.slane %v1377, 7
        %v1379 = vsel %vm281, %v1378, %v1377
        %v1381 = vadd.f32 %v1367, %v1379
        %s1382 = scalar_lea.vmem %s3, 6
        %v1383 = vld [vmem:[%s1382] ss:$8 sm:$0x3]
        %1385 = vrot.lane.b32.xlu0 %v1381, 45
        %v1386 = vpop.permute.xlu0 %1385
        %v1387 = vrot.slane %v1386, 1
        %vm1388 = vcmask 367616
        %v1389 = vsel %vm1388, %v1386, %v1387
        %v1391 = vmul.f32 %v1383, %v1389
        %v1392 = vadd.f32 %v1290, %v1391
        %s1393 = sld [smem:[#allocation3 + $0x62]]
        %v1394 = vstv %s1393
        %v1395 = vadd.f32 %v1392, %v1394
        %v1396 = vxor.u32 %v1395, 2147483648
        %v1397 = vmul.f32 %v1396, 1.442695
        %v1398 = vpow.pop %v1397
        %v1399 = vadd.f32 %v1398, 1.0
        %v1400 = vrcp.pop %v1399
        %v1401 = vmul.f32 1.0, %v1400
        %v1403 = vlaneseq
        %v1404 = vshrl.u32 %v1403, 7
        %v1405 = vsub.s32 0, %v1404
        %v1406 = vrot.slane %v1401, %v1405
        %v1407 = vlaneseq
        %v1408 = vshrl.u32 %v1407, 7
        %v1409 = vsub.s32 1, %v1408
        %v1410 = vrot.slane %v1401, %v1409
        %v1413 = vmul.f32 %v574, %v1406
        %v1414 = vmul.f32 %v575, %v1410
        %v1415 = vmul.f32 %v576, %v1406
        %v1416 = vmul.f32 %v577, %v1410
        %v1417 = vmul.f32 %v578, %v1406
        %v1418 = vmul.f32 %v579, %v1410
        %v1419 = vmul.f32 %v580, %v1406
        %v1420 = vmul.f32 %v581, %v1410
        %1421 = vst [vmem:[%s238] sm:$0xff] %v1413
        %1422 = vst [vmem:[%s238 + $0x8] sm:$0xff] %v1414
        %1423 = vst [vmem:[%s238 + $0x10] sm:$0xff] %v1415
        %1424 = vst [vmem:[%s238 + $0x18] sm:$0xff] %v1416
        %1425 = vst [vmem:[%s238 + $0x20] sm:$0xff] %v1417
        %1426 = vst [vmem:[%s238 + $0x28] sm:$0xff] %v1418
        %1427 = vst [vmem:[%s238 + $0x30] sm:$0xff] %v1419
        %1428 = vst [vmem:[%s238 + $0x38] sm:$0xff] %v1420
        %p1429 = scmp.lt.s32.totalorder %s17, 1
        %s1430 = scalar_select %p1429, %s17, 1
        %s1431 = smul.addr %s1430, 8
        %s1432 = smul.addr %s1431, 8
        %s1433 = scalar_lea.vmem %s5, %s1432
        // Predicated region
        $region45: #{refm_forward.1} parent=39 // pred_check
          %p1434 = pneg %p145
        $region46: #{refm_forward.1} parent=39 // pred_check_branch
          %1436 = sbr.rel (%p1434) target = $region48
        $region47: #{refm_forward.1} parent=39 // pred_region
          _
        $region48: #{refm_forward.1} parent=39 // pred_fallthru
          _
      $region40: #{refm_forward.1} parent=5 // pred_fallthru
        _
      %p1437 = scmp.le.s32.totalorder 2, %s12
      // Predicated region
      $region49: #{refm_forward.1} parent=5 // pred_check
        %p1438 = pneg %p1437
      $region50: #{refm_forward.1} parent=5 // pred_check_branch
        %1440 = sbr.rel (%p1438) target = $region52
      $region51: #{refm_forward.1} parent=5 // pred_region
        %s1441 = ssub.s32 %s12, 2
        // Predicated region
        $region53: #{refm_forward.1} parent=51 // pred_check
          %p1442 = pneg %p151
        $region54: #{refm_forward.1} parent=51 // pred_check_branch
          %1444 = sbr.rel (%p1442) target = $region56
        $region55: #{refm_forward.1} parent=51 // pred_region
          %p1445 = scmp.lt.s32.totalorder %s18, 1
          %s1446 = scalar_select %p1445, %s18, 1
          %s1447 = smul.addr %s1446, 8
          %s1448 = smul.addr %s1447, 8
          %s1449 = scalar_lea.vmem %s5, %s1448
        $region56: #{refm_forward.1} parent=51 // pred_fallthru
          _
      $region52: #{refm_forward.1} parent=5 // pred_fallthru
        _
    $region6: #{refm_forward.1} parent=1 // loop_footer
      %s16 = sadd.s32 1, %s12
    $region7: #{refm_forward.1} parent=1 // loop_footer_branch
      %11 = sbr.rel target = $region3
    $region8: #{refm_forward.1} parent=1 // loop_exit
      _
    %1450 = vsyncpa [#allocation4], 1
    %s1451 = scalar_lea.sflag [#allocation4], 1
    %1452 = vsyncpa %s1451, 1

</llo_original>
